<compile_context>
chip_gen: v7x
topology: tpu7x:2x2x1
jax: 0.10.0
libtpu: 0.0.40
codegen_flags: <defaults>
</compile_context>

<pallas_src>
import functools

import jax
import jax.numpy as jnp
from jax.experimental import pallas as pl
from jax.experimental.pallas import tpu as pltpu

DTYPE = jnp.bfloat16
SEQLEN = 128          # WrappedMLA hardcodes seqlen for freqs_cis / mask
BATCH = 2


class Args:
    dim = 64
    n_heads = 4
    q_lora_rank = 32
    kv_lora_rank = 32
    qk_nope_head_dim = 32
    qk_rope_head_dim = 16
    v_head_dim = 32


# ------------------------------ fused kernel -------------------------------

def _rms_f32(xf, w_ref, eps):
    """RMSNorm of an f32 (M, K) block, weight ref (1, K)."""
    var = jnp.mean(xf * xf, axis=-1, keepdims=True)
    y = xf * jax.lax.rsqrt(var + eps)
    return y * w_ref[...].astype(jnp.float32)


def _mla_fused_kernel(x_ref, factor_ref, freqsk_ref, q_norm_ref, kv_norm_ref,
                      wq_a_ref, wkv_ac_ref, wkv_ape_ref, wq_b_ref, wk_ref,
                      wv_ref, wo_ref, o_ref, *, eps):
    S, D = x_ref.shape
    H = wo_ref.shape[0]

    x = x_ref[...]                                       # (S, D) bf16

    # ---- down-projections, kept in f32 through norm / rotary -------------
    hq_f = jnp.dot(x, wq_a_ref[...],
                   preferred_element_type=jnp.float32)   # (S, q_lora)
    kvc_f = jnp.dot(x, wkv_ac_ref[...],
                    preferred_element_type=jnp.float32)  # (S, kv_lora)
    kpe_f = jnp.dot(x, wkv_ape_ref[...],
                    preferred_element_type=jnp.float32)  # (S, rope)

    hq_n = _rms_f32(hq_f, q_norm_ref, eps).astype(x.dtype)     # (S, q_lora)
    kvc_n = _rms_f32(kvc_f, kv_norm_ref, eps).astype(x.dtype)  # (S, kv_lora)

    # k-side rotary: real-valued freqs == per-pair scaling (f32 math)
    kpe_rot = (kpe_f * freqsk_ref[...]).astype(x.dtype)        # (S, rope)

    # one-time LHS for the merged per-head K matmul: [kv_c_norm | k_pe_rot]
    kv_lhs = jnp.concatenate([kvc_n, kpe_rot], axis=-1)        # (S, kv_lora+rope)

    # causal mask built in-kernel (cheap VPU iota+compare, no HBM mask input)
    row = jax.lax.broadcasted_iota(jnp.int32, (S, S), 0)
    col = jax.lax.broadcasted_iota(jnp.int32, (S, S), 1)
    causal = col <= row

    factor = factor_ref[...]                              # (S, qk_head) f32

    def head_body(h, acc):
        # q up-projection for head h; scale + q-rotary folded into `factor`
        q_h = jnp.dot(hq_n, wq_b_ref[h],
                      preferred_element_type=jnp.float32)        # (S, qk_head)
        q_h = (q_h * factor).astype(x.dtype)
        # k_h = [k_nope_h | k_pe_rot] via the augmented weight (single dot)
        k_h = jnp.dot(kv_lhs, wk_ref[h],
                      preferred_element_type=jnp.float32).astype(x.dtype)
        v_h = jnp.dot(kvc_n, wv_ref[h],
                      preferred_element_type=jnp.float32).astype(x.dtype)

        # merged score matmul (K = nope + rope)
        s = jnp.einsum('sd,td->st', q_h, k_h,
                       preferred_element_type=jnp.float32)       # (S, S) f32
        s = jnp.where(causal, s, -jnp.inf)

        # softmax in float32 (matches scores.softmax(dim=-1, dtype=float32))
        m = jnp.max(s, axis=-1, keepdims=True)
        e = jnp.exp(s - m)
        denom = jnp.sum(e, axis=-1, keepdims=True)
        p = (e * pl.reciprocal(denom, approx=True)).astype(x.dtype)

        o_h = jnp.dot(p, v_h,
                      preferred_element_type=jnp.float32).astype(x.dtype)
        # per-head wo accumulation (no concat, no lane-offset wo reads)
        return acc + jnp.dot(o_h, wo_ref[h],
                             preferred_element_type=jnp.float32)

    acc = jax.lax.fori_loop(0, H, head_body,
                            jnp.zeros((S, D), jnp.float32))
    o_ref[...] = acc.astype(o_ref.dtype)


# ------------------------------- wrapper ------------------------------------

def wrapped_mla_forward(params, x, freqs_cis, args, eps=1e-6):
    if x.dtype != DTYPE:
        x = x.astype(DTYPE)
    if x.ndim == 4:                      # WrappedMLA: x.squeeze(0) for 4-D input
        x = jnp.squeeze(x, axis=0)
    B, S, D = x.shape
    H = args.n_heads
    nope, rope, dv = args.qk_nope_head_dim, args.qk_rope_head_dim, args.v_head_dim
    q_lora, kv_lora = args.q_lora_rank, args.kv_lora_rank
    qk_head = nope + rope
    scale = qk_head ** -0.5              # no yarn mscale (max_seq_len == original)

    # pair-repeat the real-valued freqs once: (S, rope//2) -> (S, rope), f32
    freqs_rep = jnp.repeat(freqs_cis.astype(jnp.float32), 2, axis=-1)
    # folded q-side multiplier: scale on nope lanes, scale*freqs on rope lanes
    factor = scale * jnp.concatenate(
        [jnp.ones((S, nope), jnp.float32), freqs_rep], axis=-1)   # (S, qk_head)

    q_norm = params['q_norm'].reshape(1, -1)
    kv_norm = params['kv_norm'].reshape(1, -1)
    wq_a = params['wq_a']                                  # (D, q_lora)
    wkv_a_c = params['wkv_a'][:, :kv_lora]                 # (D, kv_lora)
    wkv_a_pe = params['wkv_a'][:, kv_lora:]                # (D, rope)

    # head-major up-projection weights (layout plumbing done once, outside kernel)
    wq_b = params['wq_b'].reshape(q_lora, H, qk_head).transpose(1, 0, 2)
    wkv_b = params['wkv_b'].reshape(kv_lora, H, nope + dv).transpose(1, 0, 2)
    wkv_b_nope = wkv_b[:, :, :nope]                        # (H, kv_lora, nope)
    wkv_b_v = wkv_b[:, :, nope:]                           # (H, kv_lora, dv)
    # augmented K weight: [kv_c_norm | k_pe_rot] @ wk -> [k_nope | k_pe_rot]
    wk = jnp.zeros((H, kv_lora + rope, qk_head), DTYPE)
    wk = wk.at[:, :kv_lora, :nope].set(wkv_b_nope)
    wk = wk.at[:, kv_lora:, nope:].set(jnp.eye(rope, dtype=DTYPE))
    wo = params['wo'].reshape(H, dv, D)                    # (H, dv, D)

    kernel = functools.partial(_mla_fused_kernel, eps=eps)

    def full_spec(a):
        n = a.ndim
        return pl.BlockSpec(a.shape, lambda b, _n=n: (0,) * _n)

    return pl.pallas_call(
        kernel,
        out_shape=jax.ShapeDtypeStruct((B, S, D), DTYPE),
        grid=(B,),
        in_specs=[
            pl.BlockSpec((None, S, D), lambda b: (b, 0, 0)),    # x, per batch
            full_spec(factor),
            full_spec(freqs_rep),
            full_spec(q_norm),
            full_spec(kv_norm),
            full_spec(wq_a),
            full_spec(wkv_a_c),
            full_spec(wkv_a_pe),
            full_spec(wq_b),
            full_spec(wk),
            full_spec(wkv_b_v),
            full_spec(wo),
        ],
        out_specs=pl.BlockSpec((None, S, D), lambda b: (b, 0, 0)),
        compiler_params=pltpu.CompilerParams(
            dimension_semantics=("parallel",)),   # B=2 shards across v7x's 2 TCs
    )(x, factor, freqs_rep, q_norm, kv_norm, wq_a, wkv_a_c, wkv_a_pe,
      wq_b, wk, wkv_b_v, wo)


def init_params(key, args):
    def w(k, shape):
        return (0.02 * jax.random.normal(k, shape, dtype=jnp.float32)).astype(DTYPE)

    qk_head_dim = args.qk_nope_head_dim + args.qk_rope_head_dim
    ks = jax.random.split(key, 5)
    return {
        'wq_a': w(ks[0], (args.dim, args.q_lora_rank)),
        'q_norm': jnp.ones((args.q_lora_rank,), DTYPE),
        'wq_b': w(ks[1], (args.q_lora_rank, args.n_heads * qk_head_dim)),
        'wkv_a': w(ks[2], (args.dim, args.kv_lora_rank + args.qk_rope_head_dim)),
        'kv_norm': jnp.ones((args.kv_lora_rank,), DTYPE),
        'wkv_b': w(ks[3], (args.kv_lora_rank,
                           args.n_heads * (args.qk_nope_head_dim + args.v_head_dim))),
        'wo': w(ks[4], (args.n_heads * args.v_head_dim, args.dim)),
    }


if __name__ == "__main__":
    args = Args()
    key = jax.random.PRNGKey(0)
    kp, kx, kf = jax.random.split(key, 3)

    params = init_params(kp, args)
    x = jax.random.normal(kx, (BATCH, SEQLEN, args.dim),
                          dtype=jnp.float32).astype(DTYPE)
    # WrappedMLA builds freqs_cis with torch.randn (REAL bf16)
    freqs_cis = jax.random.normal(kf, (SEQLEN, args.qk_rope_head_dim // 2),
                                  dtype=jnp.float32).astype(DTYPE)

    fwd = jax.jit(functools.partial(wrapped_mla_forward, args=args))
    out = fwd(params, x, freqs_cis)
    jax.block_until_ready(out)
    assert out.shape == (BATCH, SEQLEN, args.dim)
    assert out.dtype == DTYPE
    print("KERNEL_OK")
</pallas_src>

<mosaic_0001>
module attributes {stable_mosaic.version = 11 : i64} {
  func.func @_mla_fused_kernel(%arg0: i32, %arg1: memref<1x128x64xbf16, #tpu.memory_space<vmem>>, %arg2: memref<128x48xf32, #tpu.memory_space<vmem>>, %arg3: memref<128x16xf32, #tpu.memory_space<vmem>>, %arg4: memref<1x32xbf16, #tpu.memory_space<vmem>>, %arg5: memref<1x32xbf16, #tpu.memory_space<vmem>>, %arg6: memref<64x32xbf16, #tpu.memory_space<vmem>>, %arg7: memref<64x32xbf16, #tpu.memory_space<vmem>>, %arg8: memref<64x16xbf16, #tpu.memory_space<vmem>>, %arg9: memref<4x32x48xbf16, #tpu.memory_space<vmem>>, %arg10: memref<4x48x48xbf16, #tpu.memory_space<vmem>>, %arg11: memref<4x32x32xbf16, #tpu.memory_space<vmem>>, %arg12: memref<4x32x64xbf16, #tpu.memory_space<vmem>>, %arg13: memref<1x128x64xbf16, #tpu.memory_space<vmem>>) attributes {dimension_semantics = [#tpu.dimension_semantics<parallel>], iteration_bounds = array<i64: 2>, scalar_prefetch = 0 : i64, scratch_operands = 0 : i64, tpu.core_type = #tpu.core_type<tc>, window_params = [{transform_indices = @transform_0, window_bounds = array<i64: 1, 128, 64>}, {pipeline_mode = #tpu.pipeline_mode<synchronous>, transform_indices = @transform_1, window_bounds = array<i64: 128, 48>}, {pipeline_mode = #tpu.pipeline_mode<synchronous>, transform_indices = @transform_2, window_bounds = array<i64: 128, 16>}, {pipeline_mode = #tpu.pipeline_mode<synchronous>, transform_indices = @transform_3, window_bounds = array<i64: 1, 32>}, {pipeline_mode = #tpu.pipeline_mode<synchronous>, transform_indices = @transform_4, window_bounds = array<i64: 1, 32>}, {pipeline_mode = #tpu.pipeline_mode<synchronous>, transform_indices = @transform_5, window_bounds = array<i64: 64, 32>}, {pipeline_mode = #tpu.pipeline_mode<synchronous>, transform_indices = @transform_6, window_bounds = array<i64: 64, 32>}, {pipeline_mode = #tpu.pipeline_mode<synchronous>, transform_indices = @transform_7, window_bounds = array<i64: 64, 16>}, {pipeline_mode = #tpu.pipeline_mode<synchronous>, transform_indices = @transform_8, window_bounds = array<i64: 4, 32, 48>}, {pipeline_mode = #tpu.pipeline_mode<synchronous>, transform_indices = @transform_9, window_bounds = array<i64: 4, 48, 48>}, {pipeline_mode = #tpu.pipeline_mode<synchronous>, transform_indices = @transform_10, window_bounds = array<i64: 4, 32, 32>}, {pipeline_mode = #tpu.pipeline_mode<synchronous>, transform_indices = @transform_11, window_bounds = array<i64: 4, 32, 64>}, {transform_indices = @transform_12, window_bounds = array<i64: 1, 128, 64>}]} {
    %c0 = arith.constant 0 : index
    %c0_0 = arith.constant 0 : index
    %c0_1 = arith.constant 0 : index
    %0 = vector.load %arg1[%c0, %c0_0, %c0_1] : memref<1x128x64xbf16, #tpu.memory_space<vmem>>, vector<1x128x64xbf16>
    %1 = vector.shape_cast %0 : vector<1x128x64xbf16> to vector<128x64xbf16>
    %c0_2 = arith.constant 0 : index
    %c0_3 = arith.constant 0 : index
    %2 = vector.load %arg6[%c0_2, %c0_3] : memref<64x32xbf16, #tpu.memory_space<vmem>>, vector<64x32xbf16>
    %cst = arith.constant dense<0.000000e+00> : vector<128x32xf32>
    %3 = tpu.matmul %1, %2, %cst {dimension_numbers = #tpu.dot_dimension_numbers<[1], [0], [0], [1], [0, 0, 1, 1], [], []>} : vector<128x64xbf16>, vector<64x32xbf16>, vector<128x32xf32> -> vector<128x32xf32>
    %c0_4 = arith.constant 0 : index
    %c0_5 = arith.constant 0 : index
    %4 = vector.load %arg7[%c0_4, %c0_5] : memref<64x32xbf16, #tpu.memory_space<vmem>>, vector<64x32xbf16>
    %cst_6 = arith.constant dense<0.000000e+00> : vector<128x32xf32>
    %5 = tpu.matmul %1, %4, %cst_6 {dimension_numbers = #tpu.dot_dimension_numbers<[1], [0], [0], [1], [0, 0, 1, 1], [], []>} : vector<128x64xbf16>, vector<64x32xbf16>, vector<128x32xf32> -> vector<128x32xf32>
    %c0_7 = arith.constant 0 : index
    %c0_8 = arith.constant 0 : index
    %6 = vector.load %arg8[%c0_7, %c0_8] : memref<64x16xbf16, #tpu.memory_space<vmem>>, vector<64x16xbf16>
    %cst_9 = arith.constant dense<0.000000e+00> : vector<128x16xf32>
    %7 = tpu.matmul %1, %6, %cst_9 {dimension_numbers = #tpu.dot_dimension_numbers<[1], [0], [0], [1], [0, 0, 1, 1], [], []>} : vector<128x64xbf16>, vector<64x16xbf16>, vector<128x16xf32> -> vector<128x16xf32>
    %8 = arith.mulf %3, %3 : vector<128x32xf32>
    %cst_10 = arith.constant dense<0.000000e+00> : vector<128xf32>
    %9 = vector.multi_reduction <add>, %8, %cst_10 [1] : vector<128x32xf32> to vector<128xf32>
    %10 = vector.shape_cast %9 : vector<128xf32> to vector<128x1xf32>
    %cst_11 = arith.constant 3.200000e+01 : f32
    %11 = vector.broadcast %cst_11 : f32 to vector<128x1xf32>
    %12 = arith.divf %10, %11 : vector<128x1xf32>
    %cst_12 = arith.constant 9.99999997E-7 : f32
    %13 = vector.broadcast %cst_12 : f32 to vector<128x1xf32>
    %14 = arith.addf %12, %13 : vector<128x1xf32>
    %15 = math.rsqrt %14 : vector<128x1xf32>
    %16 = vector.broadcast %15 : vector<128x1xf32> to vector<128x32xf32>
    %17 = arith.mulf %3, %16 : vector<128x32xf32>
    %c0_13 = arith.constant 0 : index
    %c0_14 = arith.constant 0 : index
    %18 = vector.load %arg4[%c0_13, %c0_14] : memref<1x32xbf16, #tpu.memory_space<vmem>>, vector<1x32xbf16>
    %19 = arith.extf %18 : vector<1x32xbf16> to vector<1x32xf32>
    %20 = vector.broadcast %19 : vector<1x32xf32> to vector<128x32xf32>
    %21 = arith.mulf %17, %20 : vector<128x32xf32>
    %22 = arith.truncf %21 : vector<128x32xf32> to vector<128x32xbf16>
    %23 = arith.mulf %5, %5 : vector<128x32xf32>
    %cst_15 = arith.constant dense<0.000000e+00> : vector<128xf32>
    %24 = vector.multi_reduction <add>, %23, %cst_15 [1] : vector<128x32xf32> to vector<128xf32>
    %25 = vector.shape_cast %24 : vector<128xf32> to vector<128x1xf32>
    %cst_16 = arith.constant 3.200000e+01 : f32
    %26 = vector.broadcast %cst_16 : f32 to vector<128x1xf32>
    %27 = arith.divf %25, %26 : vector<128x1xf32>
    %cst_17 = arith.constant 9.99999997E-7 : f32
    %28 = vector.broadcast %cst_17 : f32 to vector<128x1xf32>
    %29 = arith.addf %27, %28 : vector<128x1xf32>
    %30 = math.rsqrt %29 : vector<128x1xf32>
    %31 = vector.broadcast %30 : vector<128x1xf32> to vector<128x32xf32>
    %32 = arith.mulf %5, %31 : vector<128x32xf32>
    %c0_18 = arith.constant 0 : index
    %c0_19 = arith.constant 0 : index
    %33 = vector.load %arg5[%c0_18, %c0_19] : memref<1x32xbf16, #tpu.memory_space<vmem>>, vector<1x32xbf16>
    %34 = arith.extf %33 : vector<1x32xbf16> to vector<1x32xf32>
    %35 = vector.broadcast %34 : vector<1x32xf32> to vector<128x32xf32>
    %36 = arith.mulf %32, %35 : vector<128x32xf32>
    %37 = arith.truncf %36 : vector<128x32xf32> to vector<128x32xbf16>
    %c0_20 = arith.constant 0 : index
    %c0_21 = arith.constant 0 : index
    %38 = vector.load %arg3[%c0_20, %c0_21] : memref<128x16xf32, #tpu.memory_space<vmem>>, vector<128x16xf32>
    %39 = arith.mulf %7, %38 : vector<128x16xf32>
    %40 = arith.truncf %39 : vector<128x16xf32> to vector<128x16xbf16>
    %41 = tpu.concatenate %37, %40 in 1 : vector<128x32xbf16>, vector<128x16xbf16> -> vector<128x48xbf16>
    %42 = tpu.iota {dimensions = array<i32: 0>} : vector<128x128xi32>
    %43 = tpu.iota {dimensions = array<i32: 1>} : vector<128x128xi32>
    %44 = arith.cmpi sle, %43, %42 : vector<128x128xi32>
    %c0_22 = arith.constant 0 : index
    %c0_23 = arith.constant 0 : index
    %45 = vector.load %arg2[%c0_22, %c0_23] : memref<128x48xf32, #tpu.memory_space<vmem>>, vector<128x48xf32>
    %cst_24 = arith.constant 0.000000e+00 : f32
    %46 = vector.broadcast %cst_24 : f32 to vector<128x64xf32>
    %c0_i32 = arith.constant 0 : i32
    %c4_i32 = arith.constant 4 : i32
    %47 = arith.addi %c0_i32, %c4_i32 : i32
    %c1_i32 = arith.constant 1 : i32
    %48 = scf.for %arg14 = %c0_i32 to %47 step %c1_i32 iter_args(%arg15 = %46) -> (vector<128x64xf32>)  : i32 {
      %53 = arith.index_cast %arg14 : i32 to index
      %c0_29 = arith.constant 0 : index
      %c0_30 = arith.constant 0 : index
      %54 = vector.load %arg9[%53, %c0_29, %c0_30] : memref<4x32x48xbf16, #tpu.memory_space<vmem>>, vector<1x32x48xbf16>
      %55 = vector.shape_cast %54 : vector<1x32x48xbf16> to vector<32x48xbf16>
      %cst_31 = arith.constant dense<0.000000e+00> : vector<128x48xf32>
      %56 = tpu.matmul %22, %55, %cst_31 {dimension_numbers = #tpu.dot_dimension_numbers<[1], [0], [0], [1], [0, 0, 1, 1], [], []>} : vector<128x32xbf16>, vector<32x48xbf16>, vector<128x48xf32> -> vector<128x48xf32>
      %57 = arith.mulf %56, %45 : vector<128x48xf32>
      %58 = arith.truncf %57 : vector<128x48xf32> to vector<128x48xbf16>
      %59 = arith.index_cast %arg14 : i32 to index
      %c0_32 = arith.constant 0 : index
      %c0_33 = arith.constant 0 : index
      %60 = vector.load %arg10[%59, %c0_32, %c0_33] : memref<4x48x48xbf16, #tpu.memory_space<vmem>>, vector<1x48x48xbf16>
      %61 = vector.shape_cast %60 : vector<1x48x48xbf16> to vector<48x48xbf16>
      %cst_34 = arith.constant dense<0.000000e+00> : vector<128x48xf32>
      %62 = tpu.matmul %41, %61, %cst_34 {dimension_numbers = #tpu.dot_dimension_numbers<[1], [0], [0], [1], [0, 0, 1, 1], [], []>} : vector<128x48xbf16>, vector<48x48xbf16>, vector<128x48xf32> -> vector<128x48xf32>
      %63 = arith.truncf %62 : vector<128x48xf32> to vector<128x48xbf16>
      %64 = arith.index_cast %arg14 : i32 to index
      %c0_35 = arith.constant 0 : index
      %c0_36 = arith.constant 0 : index
      %65 = vector.load %arg11[%64, %c0_35, %c0_36] : memref<4x32x32xbf16, #tpu.memory_space<vmem>>, vector<1x32x32xbf16>
      %66 = vector.shape_cast %65 : vector<1x32x32xbf16> to vector<32x32xbf16>
      %cst_37 = arith.constant dense<0.000000e+00> : vector<128x32xf32>
      %67 = tpu.matmul %37, %66, %cst_37 {dimension_numbers = #tpu.dot_dimension_numbers<[1], [0], [0], [1], [0, 0, 1, 1], [], []>} : vector<128x32xbf16>, vector<32x32xbf16>, vector<128x32xf32> -> vector<128x32xf32>
      %68 = arith.truncf %67 : vector<128x32xf32> to vector<128x32xbf16>
      "tpu.trace_start"() <{level = 10 : i32, message = "sd,td->st"}> : () -> ()
      %cst_38 = arith.constant dense<0.000000e+00> : vector<128x128xf32>
      %69 = tpu.matmul %58, %63, %cst_38 {dimension_numbers = #tpu.dot_dimension_numbers<[1], [1], [0], [0], [0, 0, 1, 0], [], []>} : vector<128x48xbf16>, vector<128x48xbf16>, vector<128x128xf32> -> vector<128x128xf32>
      %cst_39 = arith.constant 0xFF800000 : f32
      "tpu.trace_stop"() : () -> ()
      %70 = vector.broadcast %cst_39 : f32 to vector<128x128xf32>
      %71 = arith.select %44, %69, %70 : vector<128x128xi1>, vector<128x128xf32>
      %cst_40 = arith.constant dense<0xFF800000> : vector<128xf32>
      %72 = vector.multi_reduction <maximumf>, %71, %cst_40 [1] : vector<128x128xf32> to vector<128xf32>
      %73 = vector.shape_cast %72 : vector<128xf32> to vector<128x1xf32>
      %74 = vector.broadcast %73 : vector<128x1xf32> to vector<128x128xf32>
      %75 = arith.subf %71, %74 : vector<128x128xf32>
      %76 = math.exp %75 : vector<128x128xf32>
      %cst_41 = arith.constant dense<0.000000e+00> : vector<128xf32>
      %77 = vector.multi_reduction <add>, %76, %cst_41 [1] : vector<128x128xf32> to vector<128xf32>
      %78 = vector.shape_cast %77 : vector<128xf32> to vector<128x1xf32>
      %79 = tpu.reciprocal %78 {approx = true} : vector<128x1xf32> -> vector<128x1xf32>
      %80 = vector.broadcast %79 : vector<128x1xf32> to vector<128x128xf32>
      %81 = arith.mulf %76, %80 : vector<128x128xf32>
      %82 = arith.truncf %81 : vector<128x128xf32> to vector<128x128xbf16>
      %cst_42 = arith.constant dense<0.000000e+00> : vector<128x32xf32>
      %83 = tpu.matmul %82, %68, %cst_42 {dimension_numbers = #tpu.dot_dimension_numbers<[1], [0], [0], [1], [0, 0, 1, 1], [], []>} : vector<128x128xbf16>, vector<128x32xbf16>, vector<128x32xf32> -> vector<128x32xf32>
      %84 = arith.truncf %83 : vector<128x32xf32> to vector<128x32xbf16>
      %85 = arith.index_cast %arg14 : i32 to index
      %c0_43 = arith.constant 0 : index
      %c0_44 = arith.constant 0 : index
      %86 = vector.load %arg12[%85, %c0_43, %c0_44] : memref<4x32x64xbf16, #tpu.memory_space<vmem>>, vector<1x32x64xbf16>
      %87 = vector.shape_cast %86 : vector<1x32x64xbf16> to vector<32x64xbf16>
      %cst_45 = arith.constant dense<0.000000e+00> : vector<128x64xf32>
      %88 = tpu.matmul %84, %87, %cst_45 {dimension_numbers = #tpu.dot_dimension_numbers<[1], [0], [0], [1], [0, 0, 1, 1], [], []>} : vector<128x32xbf16>, vector<32x64xbf16>, vector<128x64xf32> -> vector<128x64xf32>
      %89 = arith.addf %arg15, %88 : vector<128x64xf32>
      scf.yield %89 : vector<128x64xf32>
    }
    %c4_i32_25 = arith.constant 4 : i32
    %49 = arith.truncf %48 : vector<128x64xf32> to vector<128x64xbf16>
    %c0_26 = arith.constant 0 : index
    %c0_27 = arith.constant 0 : index
    %c0_28 = arith.constant 0 : index
    %50 = vector.load %arg13[%c0_26, %c0_27, %c0_28] : memref<1x128x64xbf16, #tpu.memory_space<vmem>>, vector<1x128x64xbf16>
    %51 = vector.shape_cast %50 : vector<1x128x64xbf16> to vector<128x64xbf16>
    %52 = vector.shape_cast %49 : vector<128x64xbf16> to vector<1x128x64xbf16>
    tpu.vector_store %arg13[%c0_26, %c0_27, %c0_28], %52 {strides = array<i32>} : memref<1x128x64xbf16, #tpu.memory_space<vmem>>, vector<1x128x64xbf16>,
    return
  }
  func.func @transform_0(%arg0: i32) -> (i32, i32, i32) {
    %c0_i32 = arith.constant 0 : i32
    %c0_i32_0 = arith.constant 0 : i32
    %c0_i32_1 = arith.constant 0 : i32
    return %arg0, %c0_i32, %c0_i32_0 : i32, i32, i32
  }
  func.func @transform_1(%arg0: i32) -> (i32, i32) {
    %c0_i32 = arith.constant 0 : i32
    %c0_i32_0 = arith.constant 0 : i32
    %c0_i32_1 = arith.constant 0 : i32
    return %c0_i32, %c0_i32_0 : i32, i32
  }
  func.func @transform_2(%arg0: i32) -> (i32, i32) {
    %c0_i32 = arith.constant 0 : i32
    %c0_i32_0 = arith.constant 0 : i32
    %c0_i32_1 = arith.constant 0 : i32
    return %c0_i32, %c0_i32_0 : i32, i32
  }
  func.func @transform_3(%arg0: i32) -> (i32, i32) {
    %c0_i32 = arith.constant 0 : i32
    %c0_i32_0 = arith.constant 0 : i32
    %c0_i32_1 = arith.constant 0 : i32
    return %c0_i32, %c0_i32_0 : i32, i32
  }
  func.func @transform_4(%arg0: i32) -> (i32, i32) {
    %c0_i32 = arith.constant 0 : i32
    %c0_i32_0 = arith.constant 0 : i32
    %c0_i32_1 = arith.constant 0 : i32
    return %c0_i32, %c0_i32_0 : i32, i32
  }
  func.func @transform_5(%arg0: i32) -> (i32, i32) {
    %c0_i32 = arith.constant 0 : i32
    %c0_i32_0 = arith.constant 0 : i32
    %c0_i32_1 = arith.constant 0 : i32
    return %c0_i32, %c0_i32_0 : i32, i32
  }
  func.func @transform_6(%arg0: i32) -> (i32, i32) {
    %c0_i32 = arith.constant 0 : i32
    %c0_i32_0 = arith.constant 0 : i32
    %c0_i32_1 = arith.constant 0 : i32
    return %c0_i32, %c0_i32_0 : i32, i32
  }
  func.func @transform_7(%arg0: i32) -> (i32, i32) {
    %c0_i32 = arith.constant 0 : i32
    %c0_i32_0 = arith.constant 0 : i32
    %c0_i32_1 = arith.constant 0 : i32
    return %c0_i32, %c0_i32_0 : i32, i32
  }
  func.func @transform_8(%arg0: i32) -> (i32, i32, i32) {
    %c0_i32 = arith.constant 0 : i32
    %c0_i32_0 = arith.constant 0 : i32
    %c0_i32_1 = arith.constant 0 : i32
    %c0_i32_2 = arith.constant 0 : i32
    return %c0_i32, %c0_i32_0, %c0_i32_1 : i32, i32, i32
  }
  func.func @transform_9(%arg0: i32) -> (i32, i32, i32) {
    %c0_i32 = arith.constant 0 : i32
    %c0_i32_0 = arith.constant 0 : i32
    %c0_i32_1 = arith.constant 0 : i32
    %c0_i32_2 = arith.constant 0 : i32
    return %c0_i32, %c0_i32_0, %c0_i32_1 : i32, i32, i32
  }
  func.func @transform_10(%arg0: i32) -> (i32, i32, i32) {
    %c0_i32 = arith.constant 0 : i32
    %c0_i32_0 = arith.constant 0 : i32
    %c0_i32_1 = arith.constant 0 : i32
    %c0_i32_2 = arith.constant 0 : i32
    return %c0_i32, %c0_i32_0, %c0_i32_1 : i32, i32, i32
  }
  func.func @transform_11(%arg0: i32) -> (i32, i32, i32) {
    %c0_i32 = arith.constant 0 : i32
    %c0_i32_0 = arith.constant 0 : i32
    %c0_i32_1 = arith.constant 0 : i32
    %c0_i32_2 = arith.constant 0 : i32
    return %c0_i32, %c0_i32_0, %c0_i32_1 : i32, i32, i32
  }
  func.func @transform_12(%arg0: i32) -> (i32, i32, i32) {
    %c0_i32 = arith.constant 0 : i32
    %c0_i32_0 = arith.constant 0 : i32
    %c0_i32_1 = arith.constant 0 : i32
    return %arg0, %c0_i32, %c0_i32_0 : i32, i32, i32
  }
}

</mosaic_0001>

<llo_original>
// kernel: wrapped_mla_forward.1
$region0: #{wrapped_mla_forward.1}
  #allocation0 [shape = 'u32[]', space=smem, size = 0x4, offset = 0x4, fixed_abs, tag = 'smem constant byte address 0x4 - core index']
  #allocation1 [shape = 'u32[144,128]{1,0:T(1,128)}', space=vmem, size = 0x12000, scoped, tag = 'internal scratch']
  %s0 = inlined_call_operand.vmem [shape: bf16[2,128,64], index: 0, kind: input, shape index: {}]
  %s1 = inlined_call_operand.vmem [shape: f32[128,48], index: 1, kind: input, shape index: {}]
  %s2 = inlined_call_operand.vmem [shape: f32[128,16], index: 2, kind: input, shape index: {}]
  %s3 = inlined_call_operand.vmem [shape: bf16[1,32], index: 3, kind: input, shape index: {}]
  %s4 = inlined_call_operand.vmem [shape: bf16[1,32], index: 4, kind: input, shape index: {}]
  %s5 = inlined_call_operand.vmem [shape: bf16[64,32], index: 5, kind: input, shape index: {}]
  %s6 = inlined_call_operand.vmem [shape: bf16[64,32], index: 6, kind: input, shape index: {}]
  %s7 = inlined_call_operand.vmem [shape: bf16[64,16], index: 7, kind: input, shape index: {}]
  %s8 = inlined_call_operand.vmem [shape: bf16[4,32,48], index: 8, kind: input, shape index: {}]
  %s9 = inlined_call_operand.vmem [shape: bf16[4,48,48], index: 9, kind: input, shape index: {}]
  %s10 = inlined_call_operand.vmem [shape: bf16[4,32,32], index: 10, kind: input, shape index: {}]
  %s11 = inlined_call_operand.vmem [shape: bf16[4,32,64], index: 11, kind: input, shape index: {}]
  %s12 = inlined_call_operand.vmem [shape: bf16[2,128,64], index: 12, kind: output, shape index: {}]
  %s13 = sld [smem:[#allocation0]]
  $region88: #{wrapped_mla_forward.1} parent=0
    _
  %s15 = ssub.s32 1, %s13
  %s16 = scalar_select 0, %s15, %s13
  loop: start=0, step=1, limit=4
  $region2: #{wrapped_mla_forward.1} parent=0 // loop_pre_header
    _
  $region3: #{wrapped_mla_forward.1} parent=0 // loop_header
    %s18 = sphi 0, %s22
    %p19 = scmp.ge.s32.totalorder %s18, 4
    %s28 = sphi 0, %s30
    %s31 = sphi 0, %s28
    %s32 = sphi 0, %s31
    %s48 = sphi 0, %s32
    %s52 = sphi 0, %s52
    %s54 = sphi 0, %s52
    %s55 = sphi 0, %s54
    %s69 = sphi 0, %s55
    %s73 = sphi 0, %s73
    %s75 = sphi 0, %s73
    %s76 = sphi 0, %s75
    %s90 = sphi 0, %s76
    %s94 = sphi 0, %s94
    %s96 = sphi 0, %s94
    %s97 = sphi 0, %s96
    %s111 = sphi 0, %s97
    %s115 = sphi 0, %s115
    %s117 = sphi 0, %s115
    %s118 = sphi 0, %s117
    %s132 = sphi 0, %s118
    %s136 = sphi 0, %s136
    %s138 = sphi 0, %s136
    %s139 = sphi 0, %s138
    %s153 = sphi 0, %s139
    %s157 = sphi 0, %s157
    %s159 = sphi 0, %s157
    %s160 = sphi 0, %s159
    %s174 = sphi 0, %s160
    %s178 = sphi 0, %s178
    %s180 = sphi 0, %s178
    %s181 = sphi 0, %s180
    %s195 = sphi 0, %s181
    %s199 = sphi 0, %s199
    %s201 = sphi 0, %s199
    %s202 = sphi 0, %s201
    %s216 = sphi 0, %s202
    %s220 = sphi 0, %s220
    %s222 = sphi 0, %s220
    %s223 = sphi 0, %s222
    %s237 = sphi 0, %s223
    %s241 = sphi 0, %s241
    %s243 = sphi 0, %s241
    %s244 = sphi 0, %s243
    %s258 = sphi 0, %s244
    %s262 = sphi 0, %s262
    %s264 = sphi 0, %s262
    %s265 = sphi 0, %s264
    %s279 = sphi 0, %s265
    %s285 = sphi 0, %s287
    %s288 = sphi 0, %s285
    %s289 = sphi 0, %s288
    %s305 = sphi 0, %s289
  $region4: #{wrapped_mla_forward.1} parent=0 // loop_header_branch
    %21 = sbr.rel (%p19) target = $region8
  $region5: #{wrapped_mla_forward.1} parent=0 // loop_body
    %s23 = ssub.s32 %s18, 1
    %s24 = ssub.s32 %s18, 2
    %s25 = sadd.s32 %s18, 1
    %s26 = ssub.s32 %s18, %s25
    %p27 = scmp.eq.s32.totalorder %s26, 0
    %s29 = sadd.s32 %s28, 1
    %s30 = scalar_select %p27, %s28, %s29
    %p33 = pneg %p27
    %p34 = scmp.eq.s32.totalorder %s18, 1
    %p35 = por %p33, %p34
    %p36 = scmp.ne.s32.totalorder %s28, %s31
    %p37 = scmp.eq.s32.totalorder %s18, 0
    %p38 = por %p36, %p37
    %p39 = scmp.ne.s32.totalorder %s28, %s31
    %p40 = scmp.eq.s32.totalorder %s23, 1
    %p41 = por %p39, %p40
    %p42 = scmp.ne.s32.totalorder %s31, %s32
    %p43 = scmp.eq.s32.totalorder %s23, 0
    %p44 = por %p42, %p43
    %p45 = scmp.ne.s32.totalorder %s31, %s32
    %p46 = scmp.eq.s32.totalorder %s24, 1
    %p47 = por %p45, %p46
    %p49 = scmp.ne.s32.totalorder %s32, %s48
    %p50 = scmp.eq.s32.totalorder %s24, 0
    %p51 = por %p49, %p50
    %s53 = sadd.s32 %s52, 1
    %p56 = scmp.eq.s32.totalorder %s18, 1
    %p57 = scmp.ne.s32.totalorder %s52, %s54
    %p58 = scmp.eq.s32.totalorder %s18, 0
    %p59 = por %p57, %p58
    %p60 = scmp.ne.s32.totalorder %s52, %s54
    %p61 = scmp.eq.s32.totalorder %s23, 1
    %p62 = por %p60, %p61
    %p63 = scmp.ne.s32.totalorder %s54, %s55
    %p64 = scmp.eq.s32.totalorder %s23, 0
    %p65 = por %p63, %p64
    %p66 = scmp.ne.s32.totalorder %s54, %s55
    %p67 = scmp.eq.s32.totalorder %s24, 1
    %p68 = por %p66, %p67
    %p70 = scmp.ne.s32.totalorder %s55, %s69
    %p71 = scmp.eq.s32.totalorder %s24, 0
    %p72 = por %p70, %p71
    %s74 = sadd.s32 %s73, 1
    %p77 = scmp.eq.s32.totalorder %s18, 1
    %p78 = scmp.ne.s32.totalorder %s73, %s75
    %p79 = scmp.eq.s32.totalorder %s18, 0
    %p80 = por %p78, %p79
    %p81 = scmp.ne.s32.totalorder %s73, %s75
    %p82 = scmp.eq.s32.totalorder %s23, 1
    %p83 = por %p81, %p82
    %p84 = scmp.ne.s32.totalorder %s75, %s76
    %p85 = scmp.eq.s32.totalorder %s23, 0
    %p86 = por %p84, %p85
    %p87 = scmp.ne.s32.totalorder %s75, %s76
    %p88 = scmp.eq.s32.totalorder %s24, 1
    %p89 = por %p87, %p88
    %p91 = scmp.ne.s32.totalorder %s76, %s90
    %p92 = scmp.eq.s32.totalorder %s24, 0
    %p93 = por %p91, %p92
    %s95 = sadd.s32 %s94, 1
    %p98 = scmp.eq.s32.totalorder %s18, 1
    %p99 = scmp.ne.s32.totalorder %s94, %s96
    %p100 = scmp.eq.s32.totalorder %s18, 0
    %p101 = por %p99, %p100
    %p102 = scmp.ne.s32.totalorder %s94, %s96
    %p103 = scmp.eq.s32.totalorder %s23, 1
    %p104 = por %p102, %p103
    %p105 = scmp.ne.s32.totalorder %s96, %s97
    %p106 = scmp.eq.s32.totalorder %s23, 0
    %p107 = por %p105, %p106
    %p108 = scmp.ne.s32.totalorder %s96, %s97
    %p109 = scmp.eq.s32.totalorder %s24, 1
    %p110 = por %p108, %p109
    %p112 = scmp.ne.s32.totalorder %s97, %s111
    %p113 = scmp.eq.s32.totalorder %s24, 0
    %p114 = por %p112, %p113
    %s116 = sadd.s32 %s115, 1
    %p119 = scmp.eq.s32.totalorder %s18, 1
    %p120 = scmp.ne.s32.totalorder %s115, %s117
    %p121 = scmp.eq.s32.totalorder %s18, 0
    %p122 = por %p120, %p121
    %p123 = scmp.ne.s32.totalorder %s115, %s117
    %p124 = scmp.eq.s32.totalorder %s23, 1
    %p125 = por %p123, %p124
    %p126 = scmp.ne.s32.totalorder %s117, %s118
    %p127 = scmp.eq.s32.totalorder %s23, 0
    %p128 = por %p126, %p127
    %p129 = scmp.ne.s32.totalorder %s117, %s118
    %p130 = scmp.eq.s32.totalorder %s24, 1
    %p131 = por %p129, %p130
    %p133 = scmp.ne.s32.totalorder %s118, %s132
    %p134 = scmp.eq.s32.totalorder %s24, 0
    %p135 = por %p133, %p134
    %s137 = sadd.s32 %s136, 1
    %p140 = scmp.eq.s32.totalorder %s18, 1
    %p141 = scmp.ne.s32.totalorder %s136, %s138
    %p142 = scmp.eq.s32.totalorder %s18, 0
    %p143 = por %p141, %p142
    %p144 = scmp.ne.s32.totalorder %s136, %s138
    %p145 = scmp.eq.s32.totalorder %s23, 1
    %p146 = por %p144, %p145
    %p147 = scmp.ne.s32.totalorder %s138, %s139
    %p148 = scmp.eq.s32.totalorder %s23, 0
    %p149 = por %p147, %p148
    %p150 = scmp.ne.s32.totalorder %s138, %s139
    %p151 = scmp.eq.s32.totalorder %s24, 1
    %p152 = por %p150, %p151
    %p154 = scmp.ne.s32.totalorder %s139, %s153
    %p155 = scmp.eq.s32.totalorder %s24, 0
    %p156 = por %p154, %p155
    %s158 = sadd.s32 %s157, 1
    %p161 = scmp.eq.s32.totalorder %s18, 1
    %p162 = scmp.ne.s32.totalorder %s157, %s159
    %p163 = scmp.eq.s32.totalorder %s18, 0
    %p164 = por %p162, %p163
    %p165 = scmp.ne.s32.totalorder %s157, %s159
    %p166 = scmp.eq.s32.totalorder %s23, 1
    %p167 = por %p165, %p166
    %p168 = scmp.ne.s32.totalorder %s159, %s160
    %p169 = scmp.eq.s32.totalorder %s23, 0
    %p170 = por %p168, %p169
    %p171 = scmp.ne.s32.totalorder %s159, %s160
    %p172 = scmp.eq.s32.totalorder %s24, 1
    %p173 = por %p171, %p172
    %p175 = scmp.ne.s32.totalorder %s160, %s174
    %p176 = scmp.eq.s32.totalorder %s24, 0
    %p177 = por %p175, %p176
    %s179 = sadd.s32 %s178, 1
    %p182 = scmp.eq.s32.totalorder %s18, 1
    %p183 = scmp.ne.s32.totalorder %s178, %s180
    %p184 = scmp.eq.s32.totalorder %s18, 0
    %p185 = por %p183, %p184
    %p186 = scmp.ne.s32.totalorder %s178, %s180
    %p187 = scmp.eq.s32.totalorder %s23, 1
    %p188 = por %p186, %p187
    %p189 = scmp.ne.s32.totalorder %s180, %s181
    %p190 = scmp.eq.s32.totalorder %s23, 0
    %p191 = por %p189, %p190
    %p192 = scmp.ne.s32.totalorder %s180, %s181
    %p193 = scmp.eq.s32.totalorder %s24, 1
    %p194 = por %p192, %p193
    %p196 = scmp.ne.s32.totalorder %s181, %s195
    %p197 = scmp.eq.s32.totalorder %s24, 0
    %p198 = por %p196, %p197
    %s200 = sadd.s32 %s199, 1
    %p203 = scmp.eq.s32.totalorder %s18, 1
    %p204 = scmp.ne.s32.totalorder %s199, %s201
    %p205 = scmp.eq.s32.totalorder %s18, 0
    %p206 = por %p204, %p205
    %p207 = scmp.ne.s32.totalorder %s199, %s201
    %p208 = scmp.eq.s32.totalorder %s23, 1
    %p209 = por %p207, %p208
    %p210 = scmp.ne.s32.totalorder %s201, %s202
    %p211 = scmp.eq.s32.totalorder %s23, 0
    %p212 = por %p210, %p211
    %p213 = scmp.ne.s32.totalorder %s201, %s202
    %p214 = scmp.eq.s32.totalorder %s24, 1
    %p215 = por %p213, %p214
    %p217 = scmp.ne.s32.totalorder %s202, %s216
    %p218 = scmp.eq.s32.totalorder %s24, 0
    %p219 = por %p217, %p218
    %s221 = sadd.s32 %s220, 1
    %p224 = scmp.eq.s32.totalorder %s18, 1
    %p225 = scmp.ne.s32.totalorder %s220, %s222
    %p226 = scmp.eq.s32.totalorder %s18, 0
    %p227 = por %p225, %p226
    %p228 = scmp.ne.s32.totalorder %s220, %s222
    %p229 = scmp.eq.s32.totalorder %s23, 1
    %p230 = por %p228, %p229
    %p231 = scmp.ne.s32.totalorder %s222, %s223
    %p232 = scmp.eq.s32.totalorder %s23, 0
    %p233 = por %p231, %p232
    %p234 = scmp.ne.s32.totalorder %s222, %s223
    %p235 = scmp.eq.s32.totalorder %s24, 1
    %p236 = por %p234, %p235
    %p238 = scmp.ne.s32.totalorder %s223, %s237
    %p239 = scmp.eq.s32.totalorder %s24, 0
    %p240 = por %p238, %p239
    %s242 = sadd.s32 %s241, 1
    %p245 = scmp.eq.s32.totalorder %s18, 1
    %p246 = scmp.ne.s32.totalorder %s241, %s243
    %p247 = scmp.eq.s32.totalorder %s18, 0
    %p248 = por %p246, %p247
    %p249 = scmp.ne.s32.totalorder %s241, %s243
    %p250 = scmp.eq.s32.totalorder %s23, 1
    %p251 = por %p249, %p250
    %p252 = scmp.ne.s32.totalorder %s243, %s244
    %p253 = scmp.eq.s32.totalorder %s23, 0
    %p254 = por %p252, %p253
    %p255 = scmp.ne.s32.totalorder %s243, %s244
    %p256 = scmp.eq.s32.totalorder %s24, 1
    %p257 = por %p255, %p256
    %p259 = scmp.ne.s32.totalorder %s244, %s258
    %p260 = scmp.eq.s32.totalorder %s24, 0
    %p261 = por %p259, %p260
    %s263 = sadd.s32 %s262, 1
    %p266 = scmp.eq.s32.totalorder %s18, 1
    %p267 = scmp.ne.s32.totalorder %s262, %s264
    %p268 = scmp.eq.s32.totalorder %s18, 0
    %p269 = por %p267, %p268
    %p270 = scmp.ne.s32.totalorder %s262, %s264
    %p271 = scmp.eq.s32.totalorder %s23, 1
    %p272 = por %p270, %p271
    %p273 = scmp.ne.s32.totalorder %s264, %s265
    %p274 = scmp.eq.s32.totalorder %s23, 0
    %p275 = por %p273, %p274
    %p276 = scmp.ne.s32.totalorder %s264, %s265
    %p277 = scmp.eq.s32.totalorder %s24, 1
    %p278 = por %p276, %p277
    %p280 = scmp.ne.s32.totalorder %s265, %s279
    %p281 = scmp.eq.s32.totalorder %s24, 0
    %p282 = por %p280, %p281
    %s283 = ssub.s32 %s18, %s25
    %p284 = scmp.eq.s32.totalorder %s283, 0
    %s286 = sadd.s32 %s285, 1
    %s287 = scalar_select %p284, %s285, %s286
    %p290 = pneg %p284
    %p291 = scmp.eq.s32.totalorder %s18, 1
    %p292 = por %p290, %p291
    %p293 = scmp.ne.s32.totalorder %s285, %s288
    %p294 = scmp.eq.s32.totalorder %s18, 0
    %p295 = por %p293, %p294
    %p296 = scmp.ne.s32.totalorder %s285, %s288
    %p297 = scmp.eq.s32.totalorder %s23, 1
    %p298 = por %p296, %p297
    %p299 = scmp.ne.s32.totalorder %s288, %s289
    %p300 = scmp.eq.s32.totalorder %s23, 0
    %p301 = por %p299, %p300
    %p302 = scmp.ne.s32.totalorder %s288, %s289
    %p303 = scmp.eq.s32.totalorder %s24, 1
    %p304 = por %p302, %p303
    %p306 = scmp.ne.s32.totalorder %s289, %s305
    %p307 = scmp.eq.s32.totalorder %s24, 0
    %p308 = por %p306, %p307
    %p309 = scmp.le.s32.totalorder 1, %s18
    %p310 = scmp.lt.s32.totalorder %s18, 3
    %p311 = pnand %p309, %p310
    %p312 = pneg %p311
    // Predicated region
    $region9: #{wrapped_mla_forward.1} parent=5 // pred_check
      _
    $region10: #{wrapped_mla_forward.1} parent=5 // pred_check_branch
      %314 = sbr.rel (%p311) target = $region12
    $region11: #{wrapped_mla_forward.1} parent=5 // pred_region
      %s315 = ssub.s32 %s18, 1
      // Predicated region
      $region13: #{wrapped_mla_forward.1} parent=11 // pred_check
        %p316 = pneg %p65
      $region14: #{wrapped_mla_forward.1} parent=11 // pred_check_branch
        %318 = sbr.rel (%p316) target = $region16
      $region15: #{wrapped_mla_forward.1} parent=11 // pred_region
        _
      $region16: #{wrapped_mla_forward.1} parent=11 // pred_fallthru
        _
      // Predicated region
      $region17: #{wrapped_mla_forward.1} parent=11 // pred_check
        %p319 = pneg %p86
      $region18: #{wrapped_mla_forward.1} parent=11 // pred_check_branch
        %321 = sbr.rel (%p319) target = $region20
      $region19: #{wrapped_mla_forward.1} parent=11 // pred_region
        _
      $region20: #{wrapped_mla_forward.1} parent=11 // pred_fallthru
        _
      // Predicated region
      $region21: #{wrapped_mla_forward.1} parent=11 // pred_check
        %p322 = pneg %p107
      $region22: #{wrapped_mla_forward.1} parent=11 // pred_check_branch
        %324 = sbr.rel (%p322) target = $region24
      $region23: #{wrapped_mla_forward.1} parent=11 // pred_region
        _
      $region24: #{wrapped_mla_forward.1} parent=11 // pred_fallthru
        _
      // Predicated region
      $region25: #{wrapped_mla_forward.1} parent=11 // pred_check
        %p325 = pneg %p128
      $region26: #{wrapped_mla_forward.1} parent=11 // pred_check_branch
        %327 = sbr.rel (%p325) target = $region28
      $region27: #{wrapped_mla_forward.1} parent=11 // pred_region
        _
      $region28: #{wrapped_mla_forward.1} parent=11 // pred_fallthru
        _
      // Predicated region
      $region29: #{wrapped_mla_forward.1} parent=11 // pred_check
        %p328 = pneg %p149
      $region30: #{wrapped_mla_forward.1} parent=11 // pred_check_branch
        %330 = sbr.rel (%p328) target = $region32
      $region31: #{wrapped_mla_forward.1} parent=11 // pred_region
        _
      $region32: #{wrapped_mla_forward.1} parent=11 // pred_fallthru
        _
      // Predicated region
      $region33: #{wrapped_mla_forward.1} parent=11 // pred_check
        %p331 = pneg %p170
      $region34: #{wrapped_mla_forward.1} parent=11 // pred_check_branch
        %333 = sbr.rel (%p331) target = $region36
      $region35: #{wrapped_mla_forward.1} parent=11 // pred_region
        _
      $region36: #{wrapped_mla_forward.1} parent=11 // pred_fallthru
        _
      // Predicated region
      $region37: #{wrapped_mla_forward.1} parent=11 // pred_check
        %p334 = pneg %p191
      $region38: #{wrapped_mla_forward.1} parent=11 // pred_check_branch
        %336 = sbr.rel (%p334) target = $region40
      $region39: #{wrapped_mla_forward.1} parent=11 // pred_region
        _
      $region40: #{wrapped_mla_forward.1} parent=11 // pred_fallthru
        _
      // Predicated region
      $region41: #{wrapped_mla_forward.1} parent=11 // pred_check
        %p337 = pneg %p212
      $region42: #{wrapped_mla_forward.1} parent=11 // pred_check_branch
        %339 = sbr.rel (%p337) target = $region44
      $region43: #{wrapped_mla_forward.1} parent=11 // pred_region
        _
      $region44: #{wrapped_mla_forward.1} parent=11 // pred_fallthru
        _
      // Predicated region
      $region45: #{wrapped_mla_forward.1} parent=11 // pred_check
        %p340 = pneg %p233
      $region46: #{wrapped_mla_forward.1} parent=11 // pred_check_branch
        %342 = sbr.rel (%p340) target = $region48
      $region47: #{wrapped_mla_forward.1} parent=11 // pred_region
        _
      $region48: #{wrapped_mla_forward.1} parent=11 // pred_fallthru
        _
      // Predicated region
      $region49: #{wrapped_mla_forward.1} parent=11 // pred_check
        %p343 = pneg %p254
      $region50: #{wrapped_mla_forward.1} parent=11 // pred_check_branch
        %345 = sbr.rel (%p343) target = $region52
      $region51: #{wrapped_mla_forward.1} parent=11 // pred_region
        _
      $region52: #{wrapped_mla_forward.1} parent=11 // pred_fallthru
        _
      // Predicated region
      $region53: #{wrapped_mla_forward.1} parent=11 // pred_check
        %p346 = pneg %p275
      $region54: #{wrapped_mla_forward.1} parent=11 // pred_check_branch
        %348 = sbr.rel (%p346) target = $region56
      $region55: #{wrapped_mla_forward.1} parent=11 // pred_region
        _
      $region56: #{wrapped_mla_forward.1} parent=11 // pred_fallthru
        _
    $region12: #{wrapped_mla_forward.1} parent=5 // pred_fallthru
      _
    %p349 = scmp.lt.s32.totalorder %s18, 2
    // Predicated region
    $region57: #{wrapped_mla_forward.1} parent=5 // pred_check
      %p350 = pneg %p349
    $region58: #{wrapped_mla_forward.1} parent=5 // pred_check_branch
      %352 = sbr.rel (%p350) target = $region60
    $region59: #{wrapped_mla_forward.1} parent=5 // pred_region
      // Predicated region
      $region61: #{wrapped_mla_forward.1} parent=59 // pred_check
        %p353 = pneg %p38
      $region62: #{wrapped_mla_forward.1} parent=59 // pred_check_branch
        %355 = sbr.rel (%p353) target = $region64
      $region63: #{wrapped_mla_forward.1} parent=59 // pred_region
        %p356 = scmp.lt.s32.totalorder %s18, 1
        %s357 = scalar_select %p356, %s18, 1
        %s358 = smul.addr %s357, 16
        %s359 = smul.addr %s358, 4
        %s360 = scalar_lea.vmem %s0, %s359
      $region64: #{wrapped_mla_forward.1} parent=59 // pred_fallthru
        _
    $region60: #{wrapped_mla_forward.1} parent=5 // pred_fallthru
      _
    %p361 = scmp.le.s32.totalorder 1, %s18
    %p362 = scmp.lt.s32.totalorder %s18, 3
    %p363 = pnand %p361, %p362
    %p364 = pneg %p363
    // Predicated region
    $region65: #{wrapped_mla_forward.1} parent=5 // pred_check
      _
    $region66: #{wrapped_mla_forward.1} parent=5 // pred_check_branch
      %366 = sbr.rel (%p363) target = $region68
    $region67: #{wrapped_mla_forward.1} parent=5 // pred_region
      %s367 = ssub.s32 %s18, 1
      %p368 = scmp.lt.s32.totalorder %s23, 1
      %s369 = scalar_select %p368, %s23, 1
      %s370 = smul.addr %s369, 16
      %s371 = smul.addr %s370, 4
      %s372 = scalar_lea.vmem %s0, %s371
      %p373 = pneg %p44
      %p374 = pneg %p41
      %p375 = pneg %p65
      %p376 = pneg %p62
      %p377 = pneg %p86
      %p378 = pneg %p83
      %p379 = pneg %p107
      %p380 = pneg %p104
      %p381 = pneg %p128
      %p382 = pneg %p125
      %p383 = pneg %p149
      %p384 = pneg %p146
      %p385 = pneg %p170
      %p386 = pneg %p167
      %p387 = pneg %p191
      %p388 = pneg %p188
      %p389 = pneg %p212
      %p390 = pneg %p209
      %p391 = pneg %p233
      %p392 = pneg %p230
      %p393 = pneg %p254
      %p394 = pneg %p251
      %p395 = pneg %p275
      %p396 = pneg %p272
      %p397 = pneg %p301
      %p398 = pneg %p298
      %p399 = scmp.lt.s32.totalorder %s23, 1
      %s400 = scalar_select %p399, %s23, 1
      %s401 = smul.addr %s400, 16
      %s402 = smul.addr %s401, 4
      %s403 = scalar_lea.vmem %s12, %s402
      %p404 = scmp.lt.s32.totalorder %s23, 1
      %s405 = scalar_select %p404, %s23, 1
      %s406 = smul.addr %s405, 16
      %s407 = smul.addr %s406, 4
      %s408 = scalar_lea.vmem %s0, %s407
      %p409 = scmp.lt.s32.totalorder %s23, 1
      %s410 = scalar_select %p409, %s23, 1
      %s411 = smul.addr %s410, 16
      %s412 = smul.addr %s411, 4
      %s413 = scalar_lea.vmem %s12, %s412
      %v415 = vld [vmem:[%s408] sm:$0xf]
      %v416 = vld [vmem:[%s408 + $0x4] sm:$0xf]
      %v417 = vld [vmem:[%s408 + $0x8] sm:$0xf]
      %v418 = vld [vmem:[%s408 + $0xc] sm:$0xf]
      %v419 = vld [vmem:[%s408 + $0x10] sm:$0xf]
      %v420 = vld [vmem:[%s408 + $0x14] sm:$0xf]
      %v421 = vld [vmem:[%s408 + $0x18] sm:$0xf]
      %v422 = vld [vmem:[%s408 + $0x1c] sm:$0xf]
      %v423 = vld [vmem:[%s408 + $0x20] sm:$0xf]
      %v424 = vld [vmem:[%s408 + $0x24] sm:$0xf]
      %v425 = vld [vmem:[%s408 + $0x28] sm:$0xf]
      %v426 = vld [vmem:[%s408 + $0x2c] sm:$0xf]
      %v427 = vld [vmem:[%s408 + $0x30] sm:$0xf]
      %v428 = vld [vmem:[%s408 + $0x34] sm:$0xf]
      %v429 = vld [vmem:[%s408 + $0x38] sm:$0xf]
      %v430 = vld [vmem:[%s408 + $0x3c] sm:$0xf]
      %v431 = vld [vmem:[%s5] sm:$0xf]
      %v432 = vld [vmem:[%s5 + $0x4] sm:$0xf]
      %v433 = vld [vmem:[%s5 + $0x8] sm:$0xf]
      %v434 = vld [vmem:[%s5 + $0xc] sm:$0xf]
      %v435 = vld [vmem:[%s5 + $0x10] sm:$0xf]
      %v436 = vld [vmem:[%s5 + $0x14] sm:$0xf]
      %v437 = vld [vmem:[%s5 + $0x18] sm:$0xf]
      %v438 = vld [vmem:[%s5 + $0x1c] sm:$0xf]
      %v455 = vunpack.c.l.b16 %v415
      %v456 = vunpack.c.l.b16 %v416
      %v457 = vunpack.c.l.b16 %v417
      %v458 = vunpack.c.l.b16 %v418
      %v459 = vunpack.c.l.b16 %v419
      %v460 = vunpack.c.l.b16 %v420
      %v461 = vunpack.c.l.b16 %v421
      %v462 = vunpack.c.l.b16 %v422
      %v463 = vunpack.c.l.b16 %v423
      %v464 = vunpack.c.l.b16 %v424
      %v465 = vunpack.c.l.b16 %v425
      %v466 = vunpack.c.l.b16 %v426
      %v467 = vunpack.c.l.b16 %v427
      %v468 = vunpack.c.l.b16 %v428
      %v469 = vunpack.c.l.b16 %v429
      %v470 = vunpack.c.l.b16 %v430
      %v471 = vpack.c.b16 %v456, %v455
      %v472 = vpack.c.b16 %v458, %v457
      %v473 = vpack.c.b16 %v460, %v459
      %v474 = vpack.c.b16 %v462, %v461
      %v475 = vpack.c.b16 %v464, %v463
      %v476 = vpack.c.b16 %v466, %v465
      %v477 = vpack.c.b16 %v468, %v467
      %v478 = vpack.c.b16 %v470, %v469
      %v487 = vunpack.c.l.b16 %v431
      %v488 = vunpack.c.l.b16 %v432
      %v489 = vunpack.c.l.b16 %v433
      %v490 = vunpack.c.l.b16 %v434
      %v491 = vunpack.c.l.b16 %v435
      %v492 = vunpack.c.l.b16 %v436
      %v493 = vunpack.c.l.b16 %v437
      %v494 = vunpack.c.l.b16 %v438
      %v495 = vpack.c.b16 %v488, %v487
      %v496 = vpack.c.b16 %v490, %v489
      %v497 = vpack.c.b16 %v492, %v491
      %v498 = vpack.c.b16 %v494, %v493
      %vm503 = vcmask 523264
      %v505 = vsel %vm503, %v471, 0
      %v508 = vsel %vm503, %v472, 0
      %v511 = vsel %vm503, %v473, 0
      %v514 = vsel %vm503, %v474, 0
      %v517 = vsel %vm503, %v475, 0
      %v520 = vsel %vm503, %v476, 0
      %v523 = vsel %vm503, %v477, 0
      %v526 = vsel %vm503, %v478, 0
      %528 = vmatprep.subr.bf16.mxu0 0
      %529 = vmatpush1.bf16.msra.mxu0 %v495
      %530 = vmatprep.subr.bf16.mxu0 0
      %531 = vmatpush1.bf16.msra.mxu0 %v496
      %532 = vmatprep.subr.bf16.mxu0 0
      %533 = vmatpush1.bf16.msra.mxu0 %v497
      %534 = vmatprep.subr.bf16.mxu0 0
      %535 = vmatpush1.bf16.msra.mxu0 %v498
      %536 = vmatprep.subr.bf16.mxu0 0
      %537 = vmatpush1.bf16.msra.mxu0 0
      %538 = vmatprep.subr.bf16.mxu0 0
      %539 = vmatpush1.bf16.msra.mxu0 0
      %540 = vmatprep.subr.bf16.mxu0 0
      %541 = vmatpush1.bf16.msra.mxu0 0
      %542 = vmatprep.subr.bf16.mxu0 0
      %543 = vmatpush1.bf16.msra.mxu0 0
      %544 = vmatprep.subr.bf16.mxu0 0
      %545 = vmatpush1.bf16.msra.mxu0 0
      %546 = vmatprep.subr.bf16.mxu0 0
      %547 = vmatpush1.bf16.msra.mxu0 0
      %548 = vmatprep.subr.bf16.mxu0 0
      %549 = vmatpush1.bf16.msra.mxu0 0
      %550 = vmatprep.subr.bf16.mxu0 0
      %551 = vmatpush1.bf16.msra.mxu0 0
      %552 = vmatprep.subr.bf16.mxu0 0
      %553 = vmatpush1.bf16.msra.mxu0 0
      %554 = vmatprep.subr.bf16.mxu0 0
      %555 = vmatpush1.bf16.msra.mxu0 0
      %556 = vmatprep.subr.bf16.mxu0 0
      %557 = vmatpush1.bf16.msra.mxu0 0
      %558 = vmatprep.subr.bf16.mxu0 0
      %559 = vmatpush1.bf16.msra.mxu0 0
      %560 = vmatprep.mubr.bf16.mxu0 0
      %561 = vmatmul.mubr.bf16.gmra.mrb[0].mxu0 %v505
      %v562 = vpop.f32.mrb[0].mxu0
      %v563 = vadd.f32 0.0, %v562
      %v564 = vpop.f32.mrb[0].mxu0
      %v565 = vpop.f32.mrb[0].mxu0
      %v566 = vadd.f32 0.0, %v565
      %v567 = vpop.f32.mrb[0].mxu0
      %568 = vmatprep.mubr.bf16.mxu0 0
      %569 = vmatmul.mubr.bf16.gmra.mrb[0].mxu0 %v508
      %v570 = vpop.f32.mrb[0].mxu0
      %v571 = vadd.f32 0.0, %v570
      %v572 = vpop.f32.mrb[0].mxu0
      %v573 = vpop.f32.mrb[0].mxu0
      %v574 = vadd.f32 0.0, %v573
      %v575 = vpop.f32.mrb[0].mxu0
      %576 = vmatprep.mubr.bf16.mxu0 0
      %577 = vmatmul.mubr.bf16.gmra.mrb[0].mxu0 %v511
      %v578 = vpop.f32.mrb[0].mxu0
      %v579 = vadd.f32 0.0, %v578
      %v580 = vpop.f32.mrb[0].mxu0
      %v581 = vpop.f32.mrb[0].mxu0
      %v582 = vadd.f32 0.0, %v581
      %v583 = vpop.f32.mrb[0].mxu0
      %584 = vmatprep.mubr.bf16.mxu0 0
      %585 = vmatmul.mubr.bf16.gmra.mrb[0].mxu0 %v514
      %v586 = vpop.f32.mrb[0].mxu0
      %v587 = vadd.f32 0.0, %v586
      %v588 = vpop.f32.mrb[0].mxu0
      %v589 = vpop.f32.mrb[0].mxu0
      %v590 = vadd.f32 0.0, %v589
      %v591 = vpop.f32.mrb[0].mxu0
      %592 = vmatprep.mubr.bf16.mxu0 0
      %593 = vmatmul.mubr.bf16.gmra.mrb[0].mxu0 %v517
      %v594 = vpop.f32.mrb[0].mxu0
      %v595 = vadd.f32 0.0, %v594
      %v596 = vpop.f32.mrb[0].mxu0
      %v597 = vpop.f32.mrb[0].mxu0
      %v598 = vadd.f32 0.0, %v597
      %v599 = vpop.f32.mrb[0].mxu0
      %600 = vmatprep.mubr.bf16.mxu0 0
      %601 = vmatmul.mubr.bf16.gmra.mrb[0].mxu0 %v520
      %v602 = vpop.f32.mrb[0].mxu0
      %v603 = vadd.f32 0.0, %v602
      %v604 = vpop.f32.mrb[0].mxu0
      %v605 = vpop.f32.mrb[0].mxu0
      %v606 = vadd.f32 0.0, %v605
      %v607 = vpop.f32.mrb[0].mxu0
      %608 = vmatprep.mubr.bf16.mxu0 0
      %609 = vmatmul.mubr.bf16.gmra.mrb[0].mxu0 %v523
      %v610 = vpop.f32.mrb[0].mxu0
      %v611 = vadd.f32 0.0, %v610
      %v612 = vpop.f32.mrb[0].mxu0
      %v613 = vpop.f32.mrb[0].mxu0
      %v614 = vadd.f32 0.0, %v613
      %v615 = vpop.f32.mrb[0].mxu0
      %616 = vmatprep.mubr.bf16.mxu0 0
      %617 = vmatmul.mubr.bf16.gmra.mrb[0].mxu0 %v526
      %v618 = vpop.f32.mrb[0].mxu0
      %v619 = vadd.f32 0.0, %v618
      %v620 = vpop.f32.mrb[0].mxu0
      %v621 = vpop.f32.mrb[0].mxu0
      %v622 = vadd.f32 0.0, %v621
      %v623 = vpop.f32.mrb[0].mxu0
      %624 = vdwg.mxu0
      %v625 = vld [vmem:[%s6] sm:$0xf]
      %v626 = vld [vmem:[%s6 + $0x4] sm:$0xf]
      %v627 = vld [vmem:[%s6 + $0x8] sm:$0xf]
      %v628 = vld [vmem:[%s6 + $0xc] sm:$0xf]
      %v629 = vld [vmem:[%s6 + $0x10] sm:$0xf]
      %v630 = vld [vmem:[%s6 + $0x14] sm:$0xf]
      %v631 = vld [vmem:[%s6 + $0x18] sm:$0xf]
      %v632 = vld [vmem:[%s6 + $0x1c] sm:$0xf]
      %v641 = vunpack.c.l.b16 %v625
      %v642 = vunpack.c.l.b16 %v626
      %v643 = vunpack.c.l.b16 %v627
      %v644 = vunpack.c.l.b16 %v628
      %v645 = vunpack.c.l.b16 %v629
      %v646 = vunpack.c.l.b16 %v630
      %v647 = vunpack.c.l.b16 %v631
      %v648 = vunpack.c.l.b16 %v632
      %v649 = vpack.c.b16 %v642, %v641
      %v650 = vpack.c.b16 %v644, %v643
      %v651 = vpack.c.b16 %v646, %v645
      %v652 = vpack.c.b16 %v648, %v647
      %657 = vmatprep.subr.bf16.mxu0 0
      %658 = vmatpush1.bf16.msra.mxu0 %v649
      %659 = vmatprep.subr.bf16.mxu0 0
      %660 = vmatpush1.bf16.msra.mxu0 %v650
      %661 = vmatprep.subr.bf16.mxu0 0
      %662 = vmatpush1.bf16.msra.mxu0 %v651
      %663 = vmatprep.subr.bf16.mxu0 0
      %664 = vmatpush1.bf16.msra.mxu0 %v652
      %665 = vmatprep.subr.bf16.mxu0 0
      %666 = vmatpush1.bf16.msra.mxu0 0
      %667 = vmatprep.subr.bf16.mxu0 0
      %668 = vmatpush1.bf16.msra.mxu0 0
      %669 = vmatprep.subr.bf16.mxu0 0
      %670 = vmatpush1.bf16.msra.mxu0 0
      %671 = vmatprep.subr.bf16.mxu0 0
      %672 = vmatpush1.bf16.msra.mxu0 0
      %673 = vmatprep.subr.bf16.mxu0 0
      %674 = vmatpush1.bf16.msra.mxu0 0
      %675 = vmatprep.subr.bf16.mxu0 0
      %676 = vmatpush1.bf16.msra.mxu0 0
      %677 = vmatprep.subr.bf16.mxu0 0
      %678 = vmatpush1.bf16.msra.mxu0 0
      %679 = vmatprep.subr.bf16.mxu0 0
      %680 = vmatpush1.bf16.msra.mxu0 0
      %681 = vmatprep.subr.bf16.mxu0 0
      %682 = vmatpush1.bf16.msra.mxu0 0
      %683 = vmatprep.subr.bf16.mxu0 0
      %684 = vmatpush1.bf16.msra.mxu0 0
      %685 = vmatprep.subr.bf16.mxu0 0
      %686 = vmatpush1.bf16.msra.mxu0 0
      %687 = vmatprep.subr.bf16.mxu0 0
      %688 = vmatpush1.bf16.msra.mxu0 0
      %689 = vmatprep.mubr.bf16.mxu0 0
      %690 = vmatmul.mubr.bf16.gmra.mrb[0].mxu0 %v505
      %v691 = vpop.f32.mrb[0].mxu0
      %v692 = vadd.f32 0.0, %v691
      %v693 = vpop.f32.mrb[0].mxu0
      %v694 = vpop.f32.mrb[0].mxu0
      %v695 = vadd.f32 0.0, %v694
      %v696 = vpop.f32.mrb[0].mxu0
      %697 = vmatprep.mubr.bf16.mxu0 0
      %698 = vmatmul.mubr.bf16.gmra.mrb[0].mxu0 %v508
      %v699 = vpop.f32.mrb[0].mxu0
      %v700 = vadd.f32 0.0, %v699
      %v701 = vpop.f32.mrb[0].mxu0
      %v702 = vpop.f32.mrb[0].mxu0
      %v703 = vadd.f32 0.0, %v702
      %v704 = vpop.f32.mrb[0].mxu0
      %705 = vmatprep.mubr.bf16.mxu0 0
      %706 = vmatmul.mubr.bf16.gmra.mrb[0].mxu0 %v511
      %v707 = vpop.f32.mrb[0].mxu0
      %v708 = vadd.f32 0.0, %v707
      %v709 = vpop.f32.mrb[0].mxu0
      %v710 = vpop.f32.mrb[0].mxu0
      %v711 = vadd.f32 0.0, %v710
      %v712 = vpop.f32.mrb[0].mxu0
      %713 = vmatprep.mubr.bf16.mxu0 0
      %714 = vmatmul.mubr.bf16.gmra.mrb[0].mxu0 %v514
      %v715 = vpop.f32.mrb[0].mxu0
      %v716 = vadd.f32 0.0, %v715
      %v717 = vpop.f32.mrb[0].mxu0
      %v718 = vpop.f32.mrb[0].mxu0
      %v719 = vadd.f32 0.0, %v718
      %v720 = vpop.f32.mrb[0].mxu0
      %721 = vmatprep.mubr.bf16.mxu0 0
      %722 = vmatmul.mubr.bf16.gmra.mrb[0].mxu0 %v517
      %v723 = vpop.f32.mrb[0].mxu0
      %v724 = vadd.f32 0.0, %v723
      %v725 = vpop.f32.mrb[0].mxu0
      %v726 = vpop.f32.mrb[0].mxu0
      %v727 = vadd.f32 0.0, %v726
      %v728 = vpop.f32.mrb[0].mxu0
      %729 = vmatprep.mubr.bf16.mxu0 0
      %730 = vmatmul.mubr.bf16.gmra.mrb[0].mxu0 %v520
      %v731 = vpop.f32.mrb[0].mxu0
      %v732 = vadd.f32 0.0, %v731
      %v733 = vpop.f32.mrb[0].mxu0
      %v734 = vpop.f32.mrb[0].mxu0
      %v735 = vadd.f32 0.0, %v734
      %v736 = vpop.f32.mrb[0].mxu0
      %737 = vmatprep.mubr.bf16.mxu0 0
      %738 = vmatmul.mubr.bf16.gmra.mrb[0].mxu0 %v523
      %v739 = vpop.f32.mrb[0].mxu0
      %v740 = vadd.f32 0.0, %v739
      %v741 = vpop.f32.mrb[0].mxu0
      %v742 = vpop.f32.mrb[0].mxu0
      %v743 = vadd.f32 0.0, %v742
      %v744 = vpop.f32.mrb[0].mxu0
      %745 = vmatprep.mubr.bf16.mxu0 0
      %746 = vmatmul.mubr.bf16.gmra.mrb[0].mxu0 %v526
      %v747 = vpop.f32.mrb[0].mxu0
      %v748 = vadd.f32 0.0, %v747
      %v749 = vpop.f32.mrb[0].mxu0
      %v750 = vpop.f32.mrb[0].mxu0
      %v751 = vadd.f32 0.0, %v750
      %v752 = vpop.f32.mrb[0].mxu0
      %753 = vdwg.mxu0
      %v754 = vld [vmem:[%s7] sm:$0xf]
      %v755 = vld [vmem:[%s7 + $0x4] sm:$0xf]
      %v756 = vld [vmem:[%s7 + $0x8] sm:$0xf]
      %v757 = vld [vmem:[%s7 + $0xc] sm:$0xf]
      %v758 = vld [vmem:[%s7 + $0x10] sm:$0xf]
      %v759 = vld [vmem:[%s7 + $0x14] sm:$0xf]
      %v760 = vld [vmem:[%s7 + $0x18] sm:$0xf]
      %v761 = vld [vmem:[%s7 + $0x1c] sm:$0xf]
      %v770 = vunpack.c.l.b16 %v754
      %v771 = vunpack.c.l.b16 %v755
      %v772 = vunpack.c.l.b16 %v756
      %v773 = vunpack.c.l.b16 %v757
      %v774 = vunpack.c.l.b16 %v758
      %v775 = vunpack.c.l.b16 %v759
      %v776 = vunpack.c.l.b16 %v760
      %v777 = vunpack.c.l.b16 %v761
      %v778 = vpack.c.b16 %v771, %v770
      %v779 = vpack.c.b16 %v773, %v772
      %v780 = vpack.c.b16 %v775, %v774
      %v781 = vpack.c.b16 %v777, %v776
      %786 = vmatprep.subr.bf16.mxu0 0
      %787 = vmatpush1.bf16.msra.mxu0 %v778
      %788 = vmatprep.subr.bf16.mxu0 0
      %789 = vmatpush1.bf16.msra.mxu0 %v779
      %790 = vmatprep.subr.bf16.mxu0 0
      %791 = vmatpush1.bf16.msra.mxu0 %v780
      %792 = vmatprep.subr.bf16.mxu0 0
      %793 = vmatpush1.bf16.msra.mxu0 %v781
      %794 = vmatprep.subr.bf16.mxu0 0
      %795 = vmatpush1.bf16.msra.mxu0 0
      %796 = vmatprep.subr.bf16.mxu0 0
      %797 = vmatpush1.bf16.msra.mxu0 0
      %798 = vmatprep.subr.bf16.mxu0 0
      %799 = vmatpush1.bf16.msra.mxu0 0
      %800 = vmatprep.subr.bf16.mxu0 0
      %801 = vmatpush1.bf16.msra.mxu0 0
      %802 = vmatprep.subr.bf16.mxu0 0
      %803 = vmatpush1.bf16.msra.mxu0 0
      %804 = vmatprep.subr.bf16.mxu0 0
      %805 = vmatpush1.bf16.msra.mxu0 0
      %806 = vmatprep.subr.bf16.mxu0 0
      %807 = vmatpush1.bf16.msra.mxu0 0
      %808 = vmatprep.subr.bf16.mxu0 0
      %809 = vmatpush1.bf16.msra.mxu0 0
      %810 = vmatprep.subr.bf16.mxu0 0
      %811 = vmatpush1.bf16.msra.mxu0 0
      %812 = vmatprep.subr.bf16.mxu0 0
      %813 = vmatpush1.bf16.msra.mxu0 0
      %814 = vmatprep.subr.bf16.mxu0 0
      %815 = vmatpush1.bf16.msra.mxu0 0
      %816 = vmatprep.subr.bf16.mxu0 0
      %817 = vmatpush1.bf16.msra.mxu0 0
      %818 = vmatprep.mubr.bf16.mxu0 0
      %819 = vmatmul.mubr.bf16.gmra.mrb[0].mxu0 %v505
      %v820 = vpop.f32.mrb[0].mxu0
      %v821 = vadd.f32 0.0, %v820
      %v822 = vpop.f32.mrb[0].mxu0
      %v823 = vpop.f32.mrb[0].mxu0
      %v824 = vadd.f32 0.0, %v823
      %v825 = vpop.f32.mrb[0].mxu0
      %826 = vmatprep.mubr.bf16.mxu0 0
      %827 = vmatmul.mubr.bf16.gmra.mrb[0].mxu0 %v508
      %v828 = vpop.f32.mrb[0].mxu0
      %v829 = vadd.f32 0.0, %v828
      %v830 = vpop.f32.mrb[0].mxu0
      %v831 = vpop.f32.mrb[0].mxu0
      %v832 = vadd.f32 0.0, %v831
      %v833 = vpop.f32.mrb[0].mxu0
      %834 = vmatprep.mubr.bf16.mxu0 0
      %835 = vmatmul.mubr.bf16.gmra.mrb[0].mxu0 %v511
      %v836 = vpop.f32.mrb[0].mxu0
      %v837 = vadd.f32 0.0, %v836
      %v838 = vpop.f32.mrb[0].mxu0
      %v839 = vpop.f32.mrb[0].mxu0
      %v840 = vadd.f32 0.0, %v839
      %v841 = vpop.f32.mrb[0].mxu0
      %842 = vmatprep.mubr.bf16.mxu0 0
      %843 = vmatmul.mubr.bf16.gmra.mrb[0].mxu0 %v514
      %v844 = vpop.f32.mrb[0].mxu0
      %v845 = vadd.f32 0.0, %v844
      %v846 = vpop.f32.mrb[0].mxu0
      %v847 = vpop.f32.mrb[0].mxu0
      %v848 = vadd.f32 0.0, %v847
      %v849 = vpop.f32.mrb[0].mxu0
      %850 = vmatprep.mubr.bf16.mxu0 0
      %851 = vmatmul.mubr.bf16.gmra.mrb[0].mxu0 %v517
      %v852 = vpop.f32.mrb[0].mxu0
      %v853 = vadd.f32 0.0, %v852
      %v854 = vpop.f32.mrb[0].mxu0
      %v855 = vpop.f32.mrb[0].mxu0
      %v856 = vadd.f32 0.0, %v855
      %v857 = vpop.f32.mrb[0].mxu0
      %858 = vmatprep.mubr.bf16.mxu0 0
      %859 = vmatmul.mubr.bf16.gmra.mrb[0].mxu0 %v520
      %v860 = vpop.f32.mrb[0].mxu0
      %v861 = vadd.f32 0.0, %v860
      %v862 = vpop.f32.mrb[0].mxu0
      %v863 = vpop.f32.mrb[0].mxu0
      %v864 = vadd.f32 0.0, %v863
      %v865 = vpop.f32.mrb[0].mxu0
      %866 = vmatprep.mubr.bf16.mxu0 0
      %867 = vmatmul.mubr.bf16.gmra.mrb[0].mxu0 %v523
      %v868 = vpop.f32.mrb[0].mxu0
      %v869 = vadd.f32 0.0, %v868
      %v870 = vpop.f32.mrb[0].mxu0
      %v871 = vpop.f32.mrb[0].mxu0
      %v872 = vadd.f32 0.0, %v871
      %v873 = vpop.f32.mrb[0].mxu0
      %874 = vmatprep.mubr.bf16.mxu0 0
      %875 = vmatmul.mubr.bf16.gmra.mrb[0].mxu0 %v526
      %v876 = vpop.f32.mrb[0].mxu0
      %v877 = vadd.f32 0.0, %v876
      %v878 = vpop.f32.mrb[0].mxu0
      %v879 = vpop.f32.mrb[0].mxu0
      %v880 = vadd.f32 0.0, %v879
      %v881 = vpop.f32.mrb[0].mxu0
      %882 = vdwg.mxu0
      %v883 = vmul.f32 %v563, %v563
      %v884 = vmul.f32 %v566, %v566
      %v885 = vmul.f32 %v571, %v571
      %v886 = vmul.f32 %v574, %v574
      %v887 = vmul.f32 %v579, %v579
      %v888 = vmul.f32 %v582, %v582
      %v889 = vmul.f32 %v587, %v587
      %v890 = vmul.f32 %v590, %v590
      %v891 = vmul.f32 %v595, %v595
      %v892 = vmul.f32 %v598, %v598
      %v893 = vmul.f32 %v603, %v603
      %v894 = vmul.f32 %v606, %v606
      %v895 = vmul.f32 %v611, %v611
      %v896 = vmul.f32 %v614, %v614
      %v897 = vmul.f32 %v619, %v619
      %v898 = vmul.f32 %v622, %v622
      %vm899 = vcmask 261120
      %v900 = vsel %vm899, %v883, 0.0
      %901 = vadd.xlane.f32.xlu0 %v900
      %v902 = vpop.xlane.xlu0 %901
      %v903 = vsel %vm899, %v884, 0.0
      %904 = vadd.xlane.f32.xlu0 %v903
      %v905 = vpop.xlane.xlu0 %904
      %v906 = vsel %vm899, %v885, 0.0
      %907 = vadd.xlane.f32.xlu0 %v906
      %v908 = vpop.xlane.xlu0 %907
      %v909 = vsel %vm899, %v886, 0.0
      %910 = vadd.xlane.f32.xlu0 %v909
      %v911 = vpop.xlane.xlu0 %910
      %v912 = vsel %vm899, %v887, 0.0
      %913 = vadd.xlane.f32.xlu0 %v912
      %v914 = vpop.xlane.xlu0 %913
      %v915 = vsel %vm899, %v888, 0.0
      %916 = vadd.xlane.f32.xlu0 %v915
      %v917 = vpop.xlane.xlu0 %916
      %v918 = vsel %vm899, %v889, 0.0
      %919 = vadd.xlane.f32.xlu0 %v918
      %v920 = vpop.xlane.xlu0 %919
      %v921 = vsel %vm899, %v890, 0.0
      %922 = vadd.xlane.f32.xlu0 %v921
      %v923 = vpop.xlane.xlu0 %922
      %v924 = vsel %vm899, %v891, 0.0
      %925 = vadd.xlane.f32.xlu0 %v924
      %v926 = vpop.xlane.xlu0 %925
      %v927 = vsel %vm899, %v892, 0.0
      %928 = vadd.xlane.f32.xlu0 %v927
      %v929 = vpop.xlane.xlu0 %928
      %v930 = vsel %vm899, %v893, 0.0
      %931 = vadd.xlane.f32.xlu0 %v930
      %v932 = vpop.xlane.xlu0 %931
      %v933 = vsel %vm899, %v894, 0.0
      %934 = vadd.xlane.f32.xlu0 %v933
      %v935 = vpop.xlane.xlu0 %934
      %v936 = vsel %vm899, %v895, 0.0
      %937 = vadd.xlane.f32.xlu0 %v936
      %v938 = vpop.xlane.xlu0 %937
      %v939 = vsel %vm899, %v896, 0.0
      %940 = vadd.xlane.f32.xlu0 %v939
      %v941 = vpop.xlane.xlu0 %940
      %v942 = vsel %vm899, %v897, 0.0
      %943 = vadd.xlane.f32.xlu0 %v942
      %v944 = vpop.xlane.xlu0 %943
      %v945 = vsel %vm899, %v898, 0.0
      %946 = vadd.xlane.f32.xlu0 %v945
      %v947 = vpop.xlane.xlu0 %946
      %v948 = vrcp.pop 32.0
      %v949 = vmul.f32 %v902, %v948
      %v950 = vmul.f32 %v905, %v948
      %v951 = vmul.f32 %v908, %v948
      %v952 = vmul.f32 %v911, %v948
      %v953 = vmul.f32 %v914, %v948
      %v954 = vmul.f32 %v917, %v948
      %v955 = vmul.f32 %v920, %v948
      %v956 = vmul.f32 %v923, %v948
      %v957 = vmul.f32 %v926, %v948
      %v958 = vmul.f32 %v929, %v948
      %v959 = vmul.f32 %v932, %v948
      %v960 = vmul.f32 %v935, %v948
      %v961 = vmul.f32 %v938, %v948
      %v962 = vmul.f32 %v941, %v948
      %v963 = vmul.f32 %v944, %v948
      %v964 = vmul.f32 %v947, %v948
      %v965 = vadd.f32 %v949, 1e-06
      %v966 = vadd.f32 %v950, 1e-06
      %v967 = vadd.f32 %v951, 1e-06
      %v968 = vadd.f32 %v952, 1e-06
      %v969 = vadd.f32 %v953, 1e-06
      %v970 = vadd.f32 %v954, 1e-06
      %v971 = vadd.f32 %v955, 1e-06
      %v972 = vadd.f32 %v956, 1e-06
      %v973 = vadd.f32 %v957, 1e-06
      %v974 = vadd.f32 %v958, 1e-06
      %v975 = vadd.f32 %v959, 1e-06
      %v976 = vadd.f32 %v960, 1e-06
      %v977 = vadd.f32 %v961, 1e-06
      %v978 = vadd.f32 %v962, 1e-06
      %v979 = vadd.f32 %v963, 1e-06
      %v980 = vadd.f32 %v964, 1e-06
      %v981 = vrsqrt.pop %v965
      %v982 = vrsqrt.pop %v966
      %v983 = vrsqrt.pop %v967
      %v984 = vrsqrt.pop %v968
      %v985 = vrsqrt.pop %v969
      %v986 = vrsqrt.pop %v970
      %v987 = vrsqrt.pop %v971
      %v988 = vrsqrt.pop %v972
      %v989 = vrsqrt.pop %v973
      %v990 = vrsqrt.pop %v974
      %v991 = vrsqrt.pop %v975
      %v992 = vrsqrt.pop %v976
      %v993 = vrsqrt.pop %v977
      %v994 = vrsqrt.pop %v978
      %v995 = vrsqrt.pop %v979
      %v996 = vrsqrt.pop %v980
      %v997 = vmul.f32 %v563, %v981
      %v998 = vmul.f32 %v566, %v982
      %v999 = vmul.f32 %v571, %v983
      %v1000 = vmul.f32 %v574, %v984
      %v1001 = vmul.f32 %v579, %v985
      %v1002 = vmul.f32 %v582, %v986
      %v1003 = vmul.f32 %v587, %v987
      %v1004 = vmul.f32 %v590, %v988
      %v1005 = vmul.f32 %v595, %v989
      %v1006 = vmul.f32 %v598, %v990
      %v1007 = vmul.f32 %v603, %v991
      %v1008 = vmul.f32 %v606, %v992
      %v1009 = vmul.f32 %v611, %v993
      %v1010 = vmul.f32 %v614, %v994
      %v1011 = vmul.f32 %v619, %v995
      %v1012 = vmul.f32 %v622, %v996
      %v1013 = vld [vmem:[%s3] sm:$0x1]
      %v1014 = vunpack.c.l.bf16 %v1013
      %v1015 = vlaneseq
      %v1016 = vshrl.u32 %v1015, 7
      %v1017 = vsub.s32 0, %v1016
      %v1018 = vrot.slane %v1014, %v1017
      %v1019 = vmul.f32 %v997, %v1018
      %v1020 = vmul.f32 %v998, %v1018
      %v1021 = vmul.f32 %v999, %v1018
      %v1022 = vmul.f32 %v1000, %v1018
      %v1023 = vmul.f32 %v1001, %v1018
      %v1024 = vmul.f32 %v1002, %v1018
      %v1025 = vmul.f32 %v1003, %v1018
      %v1026 = vmul.f32 %v1004, %v1018
      %v1027 = vmul.f32 %v1005, %v1018
      %v1028 = vmul.f32 %v1006, %v1018
      %v1029 = vmul.f32 %v1007, %v1018
      %v1030 = vmul.f32 %v1008, %v1018
      %v1031 = vmul.f32 %v1009, %v1018
      %v1032 = vmul.f32 %v1010, %v1018
      %v1033 = vmul.f32 %v1011, %v1018
      %v1034 = vmul.f32 %v1012, %v1018
      %v1035 = vpack.c.bf16 %v1020, %v1019
      %v1036 = vpack.c.bf16 %v1022, %v1021
      %v1037 = vpack.c.bf16 %v1024, %v1023
      %v1038 = vpack.c.bf16 %v1026, %v1025
      %v1039 = vpack.c.bf16 %v1028, %v1027
      %v1040 = vpack.c.bf16 %v1030, %v1029
      %v1041 = vpack.c.bf16 %v1032, %v1031
      %v1042 = vpack.c.bf16 %v1034, %v1033
      %v1043 = vmul.f32 %v692, %v692
      %v1044 = vmul.f32 %v695, %v695
      %v1045 = vmul.f32 %v700, %v700
      %v1046 = vmul.f32 %v703, %v703
      %v1047 = vmul.f32 %v708, %v708
      %v1048 = vmul.f32 %v711, %v711
      %v1049 = vmul.f32 %v716, %v716
      %v1050 = vmul.f32 %v719, %v719
      %v1051 = vmul.f32 %v724, %v724
      %v1052 = vmul.f32 %v727, %v727
      %v1053 = vmul.f32 %v732, %v732
      %v1054 = vmul.f32 %v735, %v735
      %v1055 = vmul.f32 %v740, %v740
      %v1056 = vmul.f32 %v743, %v743
      %v1057 = vmul.f32 %v748, %v748
      %v1058 = vmul.f32 %v751, %v751
      %v1059 = vsel %vm899, %v1043, 0.0
      %1060 = vadd.xlane.f32.xlu0 %v1059
      %v1061 = vpop.xlane.xlu0 %1060
      %v1062 = vsel %vm899, %v1044, 0.0
      %1063 = vadd.xlane.f32.xlu0 %v1062
      %v1064 = vpop.xlane.xlu0 %1063
      %v1065 = vsel %vm899, %v1045, 0.0
      %1066 = vadd.xlane.f32.xlu0 %v1065
      %v1067 = vpop.xlane.xlu0 %1066
      %v1068 = vsel %vm899, %v1046, 0.0
      %1069 = vadd.xlane.f32.xlu0 %v1068
      %v1070 = vpop.xlane.xlu0 %1069
      %v1071 = vsel %vm899, %v1047, 0.0
      %1072 = vadd.xlane.f32.xlu0 %v1071
      %v1073 = vpop.xlane.xlu0 %1072
      %v1074 = vsel %vm899, %v1048, 0.0
      %1075 = vadd.xlane.f32.xlu0 %v1074
      %v1076 = vpop.xlane.xlu0 %1075
      %v1077 = vsel %vm899, %v1049, 0.0
      %1078 = vadd.xlane.f32.xlu0 %v1077
      %v1079 = vpop.xlane.xlu0 %1078
      %v1080 = vsel %vm899, %v1050, 0.0
      %1081 = vadd.xlane.f32.xlu0 %v1080
      %v1082 = vpop.xlane.xlu0 %1081
      %v1083 = vsel %vm899, %v1051, 0.0
      %1084 = vadd.xlane.f32.xlu0 %v1083
      %v1085 = vpop.xlane.xlu0 %1084
      %v1086 = vsel %vm899, %v1052, 0.0
      %1087 = vadd.xlane.f32.xlu0 %v1086
      %v1088 = vpop.xlane.xlu0 %1087
      %v1089 = vsel %vm899, %v1053, 0.0
      %1090 = vadd.xlane.f32.xlu0 %v1089
      %v1091 = vpop.xlane.xlu0 %1090
      %v1092 = vsel %vm899, %v1054, 0.0
      %1093 = vadd.xlane.f32.xlu0 %v1092
      %v1094 = vpop.xlane.xlu0 %1093
      %v1095 = vsel %vm899, %v1055, 0.0
      %1096 = vadd.xlane.f32.xlu0 %v1095
      %v1097 = vpop.xlane.xlu0 %1096
      %v1098 = vsel %vm899, %v1056, 0.0
      %1099 = vadd.xlane.f32.xlu0 %v1098
      %v1100 = vpop.xlane.xlu0 %1099
      %v1101 = vsel %vm899, %v1057, 0.0
      %1102 = vadd.xlane.f32.xlu0 %v1101
      %v1103 = vpop.xlane.xlu0 %1102
      %v1104 = vsel %vm899, %v1058, 0.0
      %1105 = vadd.xlane.f32.xlu0 %v1104
      %v1106 = vpop.xlane.xlu0 %1105
      %v1107 = vmul.f32 %v1061, %v948
      %v1108 = vmul.f32 %v1064, %v948
      %v1109 = vmul.f32 %v1067, %v948
      %v1110 = vmul.f32 %v1070, %v948
      %v1111 = vmul.f32 %v1073, %v948
      %v1112 = vmul.f32 %v1076, %v948
      %v1113 = vmul.f32 %v1079, %v948
      %v1114 = vmul.f32 %v1082, %v948
      %v1115 = vmul.f32 %v1085, %v948
      %v1116 = vmul.f32 %v1088, %v948
      %v1117 = vmul.f32 %v1091, %v948
      %v1118 = vmul.f32 %v1094, %v948
      %v1119 = vmul.f32 %v1097, %v948
      %v1120 = vmul.f32 %v1100, %v948
      %v1121 = vmul.f32 %v1103, %v948
      %v1122 = vmul.f32 %v1106, %v948
      %v1123 = vadd.f32 %v1107, 1e-06
      %v1124 = vadd.f32 %v1108, 1e-06
      %v1125 = vadd.f32 %v1109, 1e-06
      %v1126 = vadd.f32 %v1110, 1e-06
      %v1127 = vadd.f32 %v1111, 1e-06
      %v1128 = vadd.f32 %v1112, 1e-06
      %v1129 = vadd.f32 %v1113, 1e-06
      %v1130 = vadd.f32 %v1114, 1e-06
      %v1131 = vadd.f32 %v1115, 1e-06
      %v1132 = vadd.f32 %v1116, 1e-06
      %v1133 = vadd.f32 %v1117, 1e-06
      %v1134 = vadd.f32 %v1118, 1e-06
      %v1135 = vadd.f32 %v1119, 1e-06
      %v1136 = vadd.f32 %v1120, 1e-06
      %v1137 = vadd.f32 %v1121, 1e-06
      %v1138 = vadd.f32 %v1122, 1e-06
      %v1139 = vrsqrt.pop %v1123
      %v1140 = vrsqrt.pop %v1124
      %v1141 = vrsqrt.pop %v1125
      %v1142 = vrsqrt.pop %v1126
      %v1143 = vrsqrt.pop %v1127
      %v1144 = vrsqrt.pop %v1128
      %v1145 = vrsqrt.pop %v1129
      %v1146 = vrsqrt.pop %v1130
      %v1147 = vrsqrt.pop %v1131
      %v1148 = vrsqrt.pop %v1132
      %v1149 = vrsqrt.pop %v1133
      %v1150 = vrsqrt.pop %v1134
      %v1151 = vrsqrt.pop %v1135
      %v1152 = vrsqrt.pop %v1136
      %v1153 = vrsqrt.pop %v1137
      %v1154 = vrsqrt.pop %v1138
      %v1155 = vmul.f32 %v692, %v1139
      %v1156 = vmul.f32 %v695, %v1140
      %v1157 = vmul.f32 %v700, %v1141
      %v1158 = vmul.f32 %v703, %v1142
      %v1159 = vmul.f32 %v708, %v1143
      %v1160 = vmul.f32 %v711, %v1144
      %v1161 = vmul.f32 %v716, %v1145
      %v1162 = vmul.f32 %v719, %v1146
      %v1163 = vmul.f32 %v724, %v1147
      %v1164 = vmul.f32 %v727, %v1148
      %v1165 = vmul.f32 %v732, %v1149
      %v1166 = vmul.f32 %v735, %v1150
      %v1167 = vmul.f32 %v740, %v1151
      %v1168 = vmul.f32 %v743, %v1152
      %v1169 = vmul.f32 %v748, %v1153
      %v1170 = vmul.f32 %v751, %v1154
      %v1171 = vld [vmem:[%s4] sm:$0x1]
      %v1172 = vunpack.c.l.bf16 %v1171
      %v1173 = vlaneseq
      %v1174 = vshrl.u32 %v1173, 7
      %v1175 = vsub.s32 0, %v1174
      %v1176 = vrot.slane %v1172, %v1175
      %v1177 = vmul.f32 %v1155, %v1176
      %v1178 = vmul.f32 %v1156, %v1176
      %v1179 = vmul.f32 %v1157, %v1176
      %v1180 = vmul.f32 %v1158, %v1176
      %v1181 = vmul.f32 %v1159, %v1176
      %v1182 = vmul.f32 %v1160, %v1176
      %v1183 = vmul.f32 %v1161, %v1176
      %v1184 = vmul.f32 %v1162, %v1176
      %v1185 = vmul.f32 %v1163, %v1176
      %v1186 = vmul.f32 %v1164, %v1176
      %v1187 = vmul.f32 %v1165, %v1176
      %v1188 = vmul.f32 %v1166, %v1176
      %v1189 = vmul.f32 %v1167, %v1176
      %v1190 = vmul.f32 %v1168, %v1176
      %v1191 = vmul.f32 %v1169, %v1176
      %v1192 = vmul.f32 %v1170, %v1176
      %v1193 = vpack.c.bf16 %v1178, %v1177
      %v1194 = vpack.c.bf16 %v1180, %v1179
      %v1195 = vpack.c.bf16 %v1182, %v1181
      %v1196 = vpack.c.bf16 %v1184, %v1183
      %v1197 = vpack.c.bf16 %v1186, %v1185
      %v1198 = vpack.c.bf16 %v1188, %v1187
      %v1199 = vpack.c.bf16 %v1190, %v1189
      %v1200 = vpack.c.bf16 %v1192, %v1191
      %v1201 = vld [vmem:[%s2] sm:$0xff]
      %v1202 = vld [vmem:[%s2 + $0x8] sm:$0xff]
      %v1203 = vld [vmem:[%s2 + $0x10] sm:$0xff]
      %v1204 = vld [vmem:[%s2 + $0x18] sm:$0xff]
      %v1205 = vld [vmem:[%s2 + $0x20] sm:$0xff]
      %v1206 = vld [vmem:[%s2 + $0x28] sm:$0xff]
      %v1207 = vld [vmem:[%s2 + $0x30] sm:$0xff]
      %v1208 = vld [vmem:[%s2 + $0x38] sm:$0xff]
      %v1209 = vld [vmem:[%s2 + $0x40] sm:$0xff]
      %v1210 = vld [vmem:[%s2 + $0x48] sm:$0xff]
      %v1211 = vld [vmem:[%s2 + $0x50] sm:$0xff]
      %v1212 = vld [vmem:[%s2 + $0x58] sm:$0xff]
      %v1213 = vld [vmem:[%s2 + $0x60] sm:$0xff]
      %v1214 = vld [vmem:[%s2 + $0x68] sm:$0xff]
      %v1215 = vld [vmem:[%s2 + $0x70] sm:$0xff]
      %v1216 = vld [vmem:[%s2 + $0x78] sm:$0xff]
      %v1217 = vmul.f32 %v821, %v1201
      %v1218 = vmul.f32 %v824, %v1202
      %v1219 = vmul.f32 %v829, %v1203
      %v1220 = vmul.f32 %v832, %v1204
      %v1221 = vmul.f32 %v837, %v1205
      %v1222 = vmul.f32 %v840, %v1206
      %v1223 = vmul.f32 %v845, %v1207
      %v1224 = vmul.f32 %v848, %v1208
      %v1225 = vmul.f32 %v853, %v1209
      %v1226 = vmul.f32 %v856, %v1210
      %v1227 = vmul.f32 %v861, %v1211
      %v1228 = vmul.f32 %v864, %v1212
      %v1229 = vmul.f32 %v869, %v1213
      %v1230 = vmul.f32 %v872, %v1214
      %v1231 = vmul.f32 %v877, %v1215
      %v1232 = vmul.f32 %v880, %v1216
      %v1233 = vpack.c.bf16 %v1218, %v1217
      %v1234 = vpack.c.bf16 %v1220, %v1219
      %v1235 = vpack.c.bf16 %v1222, %v1221
      %v1236 = vpack.c.bf16 %v1224, %v1223
      %v1237 = vpack.c.bf16 %v1226, %v1225
      %v1238 = vpack.c.bf16 %v1228, %v1227
      %v1239 = vpack.c.bf16 %v1230, %v1229
      %v1240 = vpack.c.bf16 %v1232, %v1231
      %1249 = vrot.lane.b32.xlu0 %v1233, 32
      %v1250 = vpop.permute.xlu0 %1249
      %1251 = vrot.lane.b32.xlu0 %v1234, 32
      %v1252 = vpop.permute.xlu0 %1251
      %1253 = vrot.lane.b32.xlu0 %v1235, 32
      %v1254 = vpop.permute.xlu0 %1253
      %1255 = vrot.lane.b32.xlu0 %v1236, 32
      %v1256 = vpop.permute.xlu0 %1255
      %1257 = vrot.lane.b32.xlu0 %v1237, 32
      %v1258 = vpop.permute.xlu0 %1257
      %1259 = vrot.lane.b32.xlu0 %v1238, 32
      %v1260 = vpop.permute.xlu0 %1259
      %1261 = vrot.lane.b32.xlu0 %v1239, 32
      %v1262 = vpop.permute.xlu0 %1261
      %1263 = vrot.lane.b32.xlu0 %v1240, 32
      %v1264 = vpop.permute.xlu0 %1263
      %v1267 = vsel %vm899, %v1193, %v1250
      %v1270 = vsel %vm899, %v1194, %v1252
      %v1273 = vsel %vm899, %v1195, %v1254
      %v1276 = vsel %vm899, %v1196, %v1256
      %v1279 = vsel %vm899, %v1197, %v1258
      %v1282 = vsel %vm899, %v1198, %v1260
      %v1285 = vsel %vm899, %v1199, %v1262
      %v1288 = vsel %vm899, %v1200, %v1264
      %v1289 = vlaneseq
      %v1290 = vshrl.u32 %v1289, 7
      %v1291 = vadd.s32 %v1290, 8
      %v1292 = vadd.s32 %v1290, 16
      %v1293 = vadd.s32 %v1290, 24
      %v1294 = vadd.s32 %v1290, 32
      %v1295 = vadd.s32 %v1290, 40
      %v1296 = vadd.s32 %v1290, 48
      %v1297 = vadd.s32 %v1290, 56
      %v1298 = vadd.s32 %v1290, 64
      %v1299 = vadd.s32 %v1290, 72
      %v1300 = vadd.s32 %v1290, 80
      %v1301 = vadd.s32 %v1290, 88
      %v1302 = vadd.s32 %v1290, 96
      %v1303 = vadd.s32 %v1290, 104
      %v1304 = vadd.s32 %v1290, 112
      %v1305 = vadd.s32 %v1290, 120
      %v1306 = vlaneseq
      %v1307 = vand.u32 %v1306, 127
      %vm1308 = vcmp.le.s32.totalorder %v1307, %v1290
      %vm1309 = vcmp.le.s32.totalorder %v1307, %v1291
      %vm1310 = vcmp.le.s32.totalorder %v1307, %v1292
      %vm1311 = vcmp.le.s32.totalorder %v1307, %v1293
      %vm1312 = vcmp.le.s32.totalorder %v1307, %v1294
      %vm1313 = vcmp.le.s32.totalorder %v1307, %v1295
      %vm1314 = vcmp.le.s32.totalorder %v1307, %v1296
      %vm1315 = vcmp.le.s32.totalorder %v1307, %v1297
      %vm1316 = vcmp.le.s32.totalorder %v1307, %v1298
      %vm1317 = vcmp.le.s32.totalorder %v1307, %v1299
      %vm1318 = vcmp.le.s32.totalorder %v1307, %v1300
      %vm1319 = vcmp.le.s32.totalorder %v1307, %v1301
      %vm1320 = vcmp.le.s32.totalorder %v1307, %v1302
      %vm1321 = vcmp.le.s32.totalorder %v1307, %v1303
      %vm1322 = vcmp.le.s32.totalorder %v1307, %v1304
      %vm1323 = vcmp.le.s32.totalorder %v1307, %v1305
      %v1324 = vld [vmem:[%s1] sm:$0xff]
      %v1325 = vld [vmem:[%s1 + $0x8] sm:$0xff]
      %v1326 = vld [vmem:[%s1 + $0x10] sm:$0xff]
      %v1327 = vld [vmem:[%s1 + $0x18] sm:$0xff]
      %v1328 = vld [vmem:[%s1 + $0x20] sm:$0xff]
      %v1329 = vld [vmem:[%s1 + $0x28] sm:$0xff]
      %v1330 = vld [vmem:[%s1 + $0x30] sm:$0xff]
      %v1331 = vld [vmem:[%s1 + $0x38] sm:$0xff]
      %v1332 = vld [vmem:[%s1 + $0x40] sm:$0xff]
      %v1333 = vld [vmem:[%s1 + $0x48] sm:$0xff]
      %v1334 = vld [vmem:[%s1 + $0x50] sm:$0xff]
      %v1335 = vld [vmem:[%s1 + $0x58] sm:$0xff]
      %v1336 = vld [vmem:[%s1 + $0x60] sm:$0xff]
      %v1337 = vld [vmem:[%s1 + $0x68] sm:$0xff]
      %v1338 = vld [vmem:[%s1 + $0x70] sm:$0xff]
      %v1339 = vld [vmem:[%s1 + $0x78] sm:$0xff]
      loop: start=0, step=1, limit=4
      $region69: #{wrapped_mla_forward.1} parent=67 // loop_pre_header
        _
      $region70: #{wrapped_mla_forward.1} parent=67 // loop_header
        %s1341 = sphi 0, %s1345
        %p1342 = scmp.ge.s32.totalorder %s1341, 4
        %v1346 = vphi 0.0, %v2371
        %v1347 = vphi 0.0, %v2372
        %v1348 = vphi 0.0, %v2373
        %v1349 = vphi 0.0, %v2374
        %v1350 = vphi 0.0, %v2375
        %v1351 = vphi 0.0, %v2376
        %v1352 = vphi 0.0, %v2377
        %v1353 = vphi 0.0, %v2378
        %v1354 = vphi 0.0, %v2379
        %v1355 = vphi 0.0, %v2380
        %v1356 = vphi 0.0, %v2381
        %v1357 = vphi 0.0, %v2382
        %v1358 = vphi 0.0, %v2383
        %v1359 = vphi 0.0, %v2384
        %v1360 = vphi 0.0, %v2385
        %v1361 = vphi 0.0, %v2386
      $region71: #{wrapped_mla_forward.1} parent=67 // loop_header_branch
        %1344 = sbr.rel (%p1342) target = $region75
      $region72: #{wrapped_mla_forward.1} parent=67 // loop_body
        %s1362 = smul.u32 %s1341, 4
        %s1363 = smul.addr %s1362, 4
        %s1364 = scalar_lea.vmem %s8, %s1363
        %v1365 = vld [vmem:[%s1364] sm:$0xf]
        %v1366 = vld [vmem:[%s1364 + $0x4] sm:$0xf]
        %v1367 = vld [vmem:[%s1364 + $0x8] sm:$0xf]
        %v1368 = vld [vmem:[%s1364 + $0xc] sm:$0xf]
        %v1373 = vunpack.c.l.b16 %v1365
        %v1374 = vunpack.c.l.b16 %v1366
        %v1375 = vunpack.c.l.b16 %v1367
        %v1376 = vunpack.c.l.b16 %v1368
        %v1377 = vpack.c.b16 %v1374, %v1373
        %v1378 = vpack.c.b16 %v1376, %v1375
        %v1382 = vsel %vm899, %v1035, 0
        %v1385 = vsel %vm899, %v1036, 0
        %v1388 = vsel %vm899, %v1037, 0
        %v1391 = vsel %vm899, %v1038, 0
        %v1394 = vsel %vm899, %v1039, 0
        %v1397 = vsel %vm899, %v1040, 0
        %v1400 = vsel %vm899, %v1041, 0
        %v1403 = vsel %vm899, %v1042, 0
        %1405 = vmatprep.subr.bf16.mxu0 0
        %1406 = vmatpush1.bf16.msra.mxu0 %v1377
        %1407 = vmatprep.subr.bf16.mxu0 0
        %1408 = vmatpush1.bf16.msra.mxu0 %v1378
        %1409 = vmatprep.subr.bf16.mxu0 0
        %1410 = vmatpush1.bf16.msra.mxu0 0
        %1411 = vmatprep.subr.bf16.mxu0 0
        %1412 = vmatpush1.bf16.msra.mxu0 0
        %1413 = vmatprep.subr.bf16.mxu0 0
        %1414 = vmatpush1.bf16.msra.mxu0 0
        %1415 = vmatprep.subr.bf16.mxu0 0
        %1416 = vmatpush1.bf16.msra.mxu0 0
        %1417 = vmatprep.subr.bf16.mxu0 0
        %1418 = vmatpush1.bf16.msra.mxu0 0
        %1419 = vmatprep.subr.bf16.mxu0 0
        %1420 = vmatpush1.bf16.msra.mxu0 0
        %1421 = vmatprep.subr.bf16.mxu0 0
        %1422 = vmatpush1.bf16.msra.mxu0 0
        %1423 = vmatprep.subr.bf16.mxu0 0
        %1424 = vmatpush1.bf16.msra.mxu0 0
        %1425 = vmatprep.subr.bf16.mxu0 0
        %1426 = vmatpush1.bf16.msra.mxu0 0
        %1427 = vmatprep.subr.bf16.mxu0 0
        %1428 = vmatpush1.bf16.msra.mxu0 0
        %1429 = vmatprep.subr.bf16.mxu0 0
        %1430 = vmatpush1.bf16.msra.mxu0 0
        %1431 = vmatprep.subr.bf16.mxu0 0
        %1432 = vmatpush1.bf16.msra.mxu0 0
        %1433 = vmatprep.subr.bf16.mxu0 0
        %1434 = vmatpush1.bf16.msra.mxu0 0
        %1435 = vmatprep.subr.bf16.mxu0 0
        %1436 = vmatpush1.bf16.msra.mxu0 0
        %1437 = vmatprep.mubr.bf16.mxu0 0
        %1438 = vmatmul.mubr.bf16.gmra.mrb[0].mxu0 %v1382
        %v1439 = vpop.f32.mrb[0].mxu0
        %v1440 = vadd.f32 0.0, %v1439
        %v1441 = vpop.f32.mrb[0].mxu0
        %v1442 = vpop.f32.mrb[0].mxu0
        %v1443 = vadd.f32 0.0, %v1442
        %v1444 = vpop.f32.mrb[0].mxu0
        %1445 = vmatprep.mubr.bf16.mxu0 0
        %1446 = vmatmul.mubr.bf16.gmra.mrb[0].mxu0 %v1385
        %v1447 = vpop.f32.mrb[0].mxu0
        %v1448 = vadd.f32 0.0, %v1447
        %v1449 = vpop.f32.mrb[0].mxu0
        %v1450 = vpop.f32.mrb[0].mxu0
        %v1451 = vadd.f32 0.0, %v1450
        %v1452 = vpop.f32.mrb[0].mxu0
        %1453 = vmatprep.mubr.bf16.mxu0 0
        %1454 = vmatmul.mubr.bf16.gmra.mrb[0].mxu0 %v1388
        %v1455 = vpop.f32.mrb[0].mxu0
        %v1456 = vadd.f32 0.0, %v1455
        %v1457 = vpop.f32.mrb[0].mxu0
        %v1458 = vpop.f32.mrb[0].mxu0
        %v1459 = vadd.f32 0.0, %v1458
        %v1460 = vpop.f32.mrb[0].mxu0
        %1461 = vmatprep.mubr.bf16.mxu0 0
        %1462 = vmatmul.mubr.bf16.gmra.mrb[0].mxu0 %v1391
        %v1463 = vpop.f32.mrb[0].mxu0
        %v1464 = vadd.f32 0.0, %v1463
        %v1465 = vpop.f32.mrb[0].mxu0
        %v1466 = vpop.f32.mrb[0].mxu0
        %v1467 = vadd.f32 0.0, %v1466
        %v1468 = vpop.f32.mrb[0].mxu0
        %1469 = vmatprep.mubr.bf16.mxu0 0
        %1470 = vmatmul.mubr.bf16.gmra.mrb[0].mxu0 %v1394
        %v1471 = vpop.f32.mrb[0].mxu0
        %v1472 = vadd.f32 0.0, %v1471
        %v1473 = vpop.f32.mrb[0].mxu0
        %v1474 = vpop.f32.mrb[0].mxu0
        %v1475 = vadd.f32 0.0, %v1474
        %v1476 = vpop.f32.mrb[0].mxu0
        %1477 = vmatprep.mubr.bf16.mxu0 0
        %1478 = vmatmul.mubr.bf16.gmra.mrb[0].mxu0 %v1397
        %v1479 = vpop.f32.mrb[0].mxu0
        %v1480 = vadd.f32 0.0, %v1479
        %v1481 = vpop.f32.mrb[0].mxu0
        %v1482 = vpop.f32.mrb[0].mxu0
        %v1483 = vadd.f32 0.0, %v1482
        %v1484 = vpop.f32.mrb[0].mxu0
        %1485 = vmatprep.mubr.bf16.mxu0 0
        %1486 = vmatmul.mubr.bf16.gmra.mrb[0].mxu0 %v1400
        %v1487 = vpop.f32.mrb[0].mxu0
        %v1488 = vadd.f32 0.0, %v1487
        %v1489 = vpop.f32.mrb[0].mxu0
        %v1490 = vpop.f32.mrb[0].mxu0
        %v1491 = vadd.f32 0.0, %v1490
        %v1492 = vpop.f32.mrb[0].mxu0
        %1493 = vmatprep.mubr.bf16.mxu0 0
        %1494 = vmatmul.mubr.bf16.gmra.mrb[0].mxu0 %v1403
        %v1495 = vpop.f32.mrb[0].mxu0
        %v1496 = vadd.f32 0.0, %v1495
        %v1497 = vpop.f32.mrb[0].mxu0
        %v1498 = vpop.f32.mrb[0].mxu0
        %v1499 = vadd.f32 0.0, %v1498
        %v1500 = vpop.f32.mrb[0].mxu0
        %1501 = vdwg.mxu0
        %v1502 = vmul.f32 %v1440, %v1324
        %v1503 = vmul.f32 %v1443, %v1325
        %v1504 = vmul.f32 %v1448, %v1326
        %v1505 = vmul.f32 %v1451, %v1327
        %v1506 = vmul.f32 %v1456, %v1328
        %v1507 = vmul.f32 %v1459, %v1329
        %v1508 = vmul.f32 %v1464, %v1330
        %v1509 = vmul.f32 %v1467, %v1331
        %v1510 = vmul.f32 %v1472, %v1332
        %v1511 = vmul.f32 %v1475, %v1333
        %v1512 = vmul.f32 %v1480, %v1334
        %v1513 = vmul.f32 %v1483, %v1335
        %v1514 = vmul.f32 %v1488, %v1336
        %v1515 = vmul.f32 %v1491, %v1337
        %v1516 = vmul.f32 %v1496, %v1338
        %v1517 = vmul.f32 %v1499, %v1339
        %v1518 = vpack.c.bf16 %v1503, %v1502
        %v1519 = vpack.c.bf16 %v1505, %v1504
        %v1520 = vpack.c.bf16 %v1507, %v1506
        %v1521 = vpack.c.bf16 %v1509, %v1508
        %v1522 = vpack.c.bf16 %v1511, %v1510
        %v1523 = vpack.c.bf16 %v1513, %v1512
        %v1524 = vpack.c.bf16 %v1515, %v1514
        %v1525 = vpack.c.bf16 %v1517, %v1516
        %s1526 = smul.u32 %s1341, 6
        %s1527 = smul.addr %s1526, 4
        %s1528 = scalar_lea.vmem %s9, %s1527
        %v1529 = vld [vmem:[%s1528] sm:$0xf]
        %v1530 = vld [vmem:[%s1528 + $0x4] sm:$0xf]
        %v1531 = vld [vmem:[%s1528 + $0x8] sm:$0xf]
        %v1532 = vld [vmem:[%s1528 + $0xc] sm:$0xf]
        %v1533 = vld [vmem:[%s1528 + $0x10] sm:$0xf]
        %v1534 = vld [vmem:[%s1528 + $0x14] sm:$0xf]
        %v1541 = vunpack.c.l.b16 %v1529
        %v1542 = vunpack.c.l.b16 %v1530
        %v1543 = vunpack.c.l.b16 %v1531
        %v1544 = vunpack.c.l.b16 %v1532
        %v1545 = vunpack.c.l.b16 %v1533
        %v1546 = vunpack.c.l.b16 %v1534
        %v1547 = vpack.c.b16 %v1542, %v1541
        %v1548 = vpack.c.b16 %v1544, %v1543
        %v1549 = vpack.c.b16 %v1546, %v1545
        %vm1553 = vcmask 392192
        %v1554 = vsel %vm1553, %v1267, 0
        %v1556 = vsel %vm1553, %v1270, 0
        %v1558 = vsel %vm1553, %v1273, 0
        %v1560 = vsel %vm1553, %v1276, 0
        %v1562 = vsel %vm1553, %v1279, 0
        %v1564 = vsel %vm1553, %v1282, 0
        %v1566 = vsel %vm1553, %v1285, 0
        %v1568 = vsel %vm1553, %v1288, 0
        %1570 = vmatprep.subr.bf16.mxu0 0
        %1571 = vmatpush1.bf16.msra.mxu0 %v1547
        %1572 = vmatprep.subr.bf16.mxu0 0
        %1573 = vmatpush1.bf16.msra.mxu0 %v1548
        %1574 = vmatprep.subr.bf16.mxu0 0
        %1575 = vmatpush1.bf16.msra.mxu0 %v1549
        %1576 = vmatprep.subr.bf16.mxu0 0
        %1577 = vmatpush1.bf16.msra.mxu0 0
        %1578 = vmatprep.subr.bf16.mxu0 0
        %1579 = vmatpush1.bf16.msra.mxu0 0
        %1580 = vmatprep.subr.bf16.mxu0 0
        %1581 = vmatpush1.bf16.msra.mxu0 0
        %1582 = vmatprep.subr.bf16.mxu0 0
        %1583 = vmatpush1.bf16.msra.mxu0 0
        %1584 = vmatprep.subr.bf16.mxu0 0
        %1585 = vmatpush1.bf16.msra.mxu0 0
        %1586 = vmatprep.subr.bf16.mxu0 0
        %1587 = vmatpush1.bf16.msra.mxu0 0
        %1588 = vmatprep.subr.bf16.mxu0 0
        %1589 = vmatpush1.bf16.msra.mxu0 0
        %1590 = vmatprep.subr.bf16.mxu0 0
        %1591 = vmatpush1.bf16.msra.mxu0 0
        %1592 = vmatprep.subr.bf16.mxu0 0
        %1593 = vmatpush1.bf16.msra.mxu0 0
        %1594 = vmatprep.subr.bf16.mxu0 0
        %1595 = vmatpush1.bf16.msra.mxu0 0
        %1596 = vmatprep.subr.bf16.mxu0 0
        %1597 = vmatpush1.bf16.msra.mxu0 0
        %1598 = vmatprep.subr.bf16.mxu0 0
        %1599 = vmatpush1.bf16.msra.mxu0 0
        %1600 = vmatprep.subr.bf16.mxu0 0
        %1601 = vmatpush1.bf16.msra.mxu0 0
        %1602 = vmatprep.mubr.bf16.mxu0 0
        %1603 = vmatmul.mubr.bf16.gmra.mrb[0].mxu0 %v1554
        %v1604 = vpop.f32.mrb[0].mxu0
        %v1605 = vadd.f32 0.0, %v1604
        %v1606 = vpop.f32.mrb[0].mxu0
        %v1607 = vpop.f32.mrb[0].mxu0
        %v1608 = vadd.f32 0.0, %v1607
        %v1609 = vpop.f32.mrb[0].mxu0
        %1610 = vmatprep.mubr.bf16.mxu0 0
        %1611 = vmatmul.mubr.bf16.gmra.mrb[0].mxu0 %v1556
        %v1612 = vpop.f32.mrb[0].mxu0
        %v1613 = vadd.f32 0.0, %v1612
        %v1614 = vpop.f32.mrb[0].mxu0
        %v1615 = vpop.f32.mrb[0].mxu0
        %v1616 = vadd.f32 0.0, %v1615
        %v1617 = vpop.f32.mrb[0].mxu0
        %1618 = vmatprep.mubr.bf16.mxu0 0
        %1619 = vmatmul.mubr.bf16.gmra.mrb[0].mxu0 %v1558
        %v1620 = vpop.f32.mrb[0].mxu0
        %v1621 = vadd.f32 0.0, %v1620
        %v1622 = vpop.f32.mrb[0].mxu0
        %v1623 = vpop.f32.mrb[0].mxu0
        %v1624 = vadd.f32 0.0, %v1623
        %v1625 = vpop.f32.mrb[0].mxu0
        %1626 = vmatprep.mubr.bf16.mxu0 0
        %1627 = vmatmul.mubr.bf16.gmra.mrb[0].mxu0 %v1560
        %v1628 = vpop.f32.mrb[0].mxu0
        %v1629 = vadd.f32 0.0, %v1628
        %v1630 = vpop.f32.mrb[0].mxu0
        %v1631 = vpop.f32.mrb[0].mxu0
        %v1632 = vadd.f32 0.0, %v1631
        %v1633 = vpop.f32.mrb[0].mxu0
        %1634 = vmatprep.mubr.bf16.mxu0 0
        %1635 = vmatmul.mubr.bf16.gmra.mrb[0].mxu0 %v1562
        %v1636 = vpop.f32.mrb[0].mxu0
        %v1637 = vadd.f32 0.0, %v1636
        %v1638 = vpop.f32.mrb[0].mxu0
        %v1639 = vpop.f32.mrb[0].mxu0
        %v1640 = vadd.f32 0.0, %v1639
        %v1641 = vpop.f32.mrb[0].mxu0
        %1642 = vmatprep.mubr.bf16.mxu0 0
        %1643 = vmatmul.mubr.bf16.gmra.mrb[0].mxu0 %v1564
        %v1644 = vpop.f32.mrb[0].mxu0
        %v1645 = vadd.f32 0.0, %v1644
        %v1646 = vpop.f32.mrb[0].mxu0
        %v1647 = vpop.f32.mrb[0].mxu0
        %v1648 = vadd.f32 0.0, %v1647
        %v1649 = vpop.f32.mrb[0].mxu0
        %1650 = vmatprep.mubr.bf16.mxu0 0
        %1651 = vmatmul.mubr.bf16.gmra.mrb[0].mxu0 %v1566
        %v1652 = vpop.f32.mrb[0].mxu0
        %v1653 = vadd.f32 0.0, %v1652
        %v1654 = vpop.f32.mrb[0].mxu0
        %v1655 = vpop.f32.mrb[0].mxu0
        %v1656 = vadd.f32 0.0, %v1655
        %v1657 = vpop.f32.mrb[0].mxu0
        %1658 = vmatprep.mubr.bf16.mxu0 0
        %1659 = vmatmul.mubr.bf16.gmra.mrb[0].mxu0 %v1568
        %v1660 = vpop.f32.mrb[0].mxu0
        %v1661 = vadd.f32 0.0, %v1660
        %v1662 = vpop.f32.mrb[0].mxu0
        %v1663 = vpop.f32.mrb[0].mxu0
        %v1664 = vadd.f32 0.0, %v1663
        %v1665 = vpop.f32.mrb[0].mxu0
        %1666 = vdwg.mxu0
        %v1667 = vpack.c.bf16 %v1608, %v1605
        %v1668 = vpack.c.bf16 %v1616, %v1613
        %v1669 = vpack.c.bf16 %v1624, %v1621
        %v1670 = vpack.c.bf16 %v1632, %v1629
        %v1671 = vpack.c.bf16 %v1640, %v1637
        %v1672 = vpack.c.bf16 %v1648, %v1645
        %v1673 = vpack.c.bf16 %v1656, %v1653
        %v1674 = vpack.c.bf16 %v1664, %v1661
        %s1675 = smul.addr %s1362, 4
        %s1676 = scalar_lea.vmem %s10, %s1675
        %v1677 = vld [vmem:[%s1676] sm:$0xf]
        %v1678 = vld [vmem:[%s1676 + $0x4] sm:$0xf]
        %v1679 = vld [vmem:[%s1676 + $0x8] sm:$0xf]
        %v1680 = vld [vmem:[%s1676 + $0xc] sm:$0xf]
        %v1685 = vunpack.c.l.b16 %v1677
        %v1686 = vunpack.c.l.b16 %v1678
        %v1687 = vunpack.c.l.b16 %v1679
        %v1688 = vunpack.c.l.b16 %v1680
        %v1689 = vpack.c.b16 %v1686, %v1685
        %v1690 = vpack.c.b16 %v1688, %v1687
        %v1693 = vsel %vm899, %v1193, 0
        %v1695 = vsel %vm899, %v1194, 0
        %v1697 = vsel %vm899, %v1195, 0
        %v1699 = vsel %vm899, %v1196, 0
        %v1701 = vsel %vm899, %v1197, 0
        %v1703 = vsel %vm899, %v1198, 0
        %v1705 = vsel %vm899, %v1199, 0
        %v1707 = vsel %vm899, %v1200, 0
        %1709 = vmatprep.subr.bf16.mxu0 0
        %1710 = vmatpush1.bf16.msra.mxu0 %v1689
        %1711 = vmatprep.subr.bf16.mxu0 0
        %1712 = vmatpush1.bf16.msra.mxu0 %v1690
        %1713 = vmatprep.subr.bf16.mxu0 0
        %1714 = vmatpush1.bf16.msra.mxu0 0
        %1715 = vmatprep.subr.bf16.mxu0 0
        %1716 = vmatpush1.bf16.msra.mxu0 0
        %1717 = vmatprep.subr.bf16.mxu0 0
        %1718 = vmatpush1.bf16.msra.mxu0 0
        %1719 = vmatprep.subr.bf16.mxu0 0
        %1720 = vmatpush1.bf16.msra.mxu0 0
        %1721 = vmatprep.subr.bf16.mxu0 0
        %1722 = vmatpush1.bf16.msra.mxu0 0
        %1723 = vmatprep.subr.bf16.mxu0 0
        %1724 = vmatpush1.bf16.msra.mxu0 0
        %1725 = vmatprep.subr.bf16.mxu0 0
        %1726 = vmatpush1.bf16.msra.mxu0 0
        %1727 = vmatprep.subr.bf16.mxu0 0
        %1728 = vmatpush1.bf16.msra.mxu0 0
        %1729 = vmatprep.subr.bf16.mxu0 0
        %1730 = vmatpush1.bf16.msra.mxu0 0
        %1731 = vmatprep.subr.bf16.mxu0 0
        %1732 = vmatpush1.bf16.msra.mxu0 0
        %1733 = vmatprep.subr.bf16.mxu0 0
        %1734 = vmatpush1.bf16.msra.mxu0 0
        %1735 = vmatprep.subr.bf16.mxu0 0
        %1736 = vmatpush1.bf16.msra.mxu0 0
        %1737 = vmatprep.subr.bf16.mxu0 0
        %1738 = vmatpush1.bf16.msra.mxu0 0
        %1739 = vmatprep.subr.bf16.mxu0 0
        %1740 = vmatpush1.bf16.msra.mxu0 0
        %1741 = vmatprep.mubr.bf16.mxu0 0
        %1742 = vmatmul.mubr.bf16.gmra.mrb[0].mxu0 %v1693
        %v1743 = vpop.f32.mrb[0].mxu0
        %v1744 = vadd.f32 0.0, %v1743
        %v1745 = vpop.f32.mrb[0].mxu0
        %v1746 = vpop.f32.mrb[0].mxu0
        %v1747 = vadd.f32 0.0, %v1746
        %v1748 = vpop.f32.mrb[0].mxu0
        %1749 = vmatprep.mubr.bf16.mxu0 0
        %1750 = vmatmul.mubr.bf16.gmra.mrb[0].mxu0 %v1695
        %v1751 = vpop.f32.mrb[0].mxu0
        %v1752 = vadd.f32 0.0, %v1751
        %v1753 = vpop.f32.mrb[0].mxu0
        %v1754 = vpop.f32.mrb[0].mxu0
        %v1755 = vadd.f32 0.0, %v1754
        %v1756 = vpop.f32.mrb[0].mxu0
        %1757 = vmatprep.mubr.bf16.mxu0 0
        %1758 = vmatmul.mubr.bf16.gmra.mrb[0].mxu0 %v1697
        %v1759 = vpop.f32.mrb[0].mxu0
        %v1760 = vadd.f32 0.0, %v1759
        %v1761 = vpop.f32.mrb[0].mxu0
        %v1762 = vpop.f32.mrb[0].mxu0
        %v1763 = vadd.f32 0.0, %v1762
        %v1764 = vpop.f32.mrb[0].mxu0
        %1765 = vmatprep.mubr.bf16.mxu0 0
        %1766 = vmatmul.mubr.bf16.gmra.mrb[0].mxu0 %v1699
        %v1767 = vpop.f32.mrb[0].mxu0
        %v1768 = vadd.f32 0.0, %v1767
        %v1769 = vpop.f32.mrb[0].mxu0
        %v1770 = vpop.f32.mrb[0].mxu0
        %v1771 = vadd.f32 0.0, %v1770
        %v1772 = vpop.f32.mrb[0].mxu0
        %1773 = vmatprep.mubr.bf16.mxu0 0
        %1774 = vmatmul.mubr.bf16.gmra.mrb[0].mxu0 %v1701
        %v1775 = vpop.f32.mrb[0].mxu0
        %v1776 = vadd.f32 0.0, %v1775
        %v1777 = vpop.f32.mrb[0].mxu0
        %v1778 = vpop.f32.mrb[0].mxu0
        %v1779 = vadd.f32 0.0, %v1778
        %v1780 = vpop.f32.mrb[0].mxu0
        %1781 = vmatprep.mubr.bf16.mxu0 0
        %1782 = vmatmul.mubr.bf16.gmra.mrb[0].mxu0 %v1703
        %v1783 = vpop.f32.mrb[0].mxu0
        %v1784 = vadd.f32 0.0, %v1783
        %v1785 = vpop.f32.mrb[0].mxu0
        %v1786 = vpop.f32.mrb[0].mxu0
        %v1787 = vadd.f32 0.0, %v1786
        %v1788 = vpop.f32.mrb[0].mxu0
        %1789 = vmatprep.mubr.bf16.mxu0 0
        %1790 = vmatmul.mubr.bf16.gmra.mrb[0].mxu0 %v1705
        %v1791 = vpop.f32.mrb[0].mxu0
        %v1792 = vadd.f32 0.0, %v1791
        %v1793 = vpop.f32.mrb[0].mxu0
        %v1794 = vpop.f32.mrb[0].mxu0
        %v1795 = vadd.f32 0.0, %v1794
        %v1796 = vpop.f32.mrb[0].mxu0
        %1797 = vmatprep.mubr.bf16.mxu0 0
        %1798 = vmatmul.mubr.bf16.gmra.mrb[0].mxu0 %v1707
        %v1799 = vpop.f32.mrb[0].mxu0
        %v1800 = vadd.f32 0.0, %v1799
        %v1801 = vpop.f32.mrb[0].mxu0
        %v1802 = vpop.f32.mrb[0].mxu0
        %v1803 = vadd.f32 0.0, %v1802
        %v1804 = vpop.f32.mrb[0].mxu0
        %1805 = vdwg.mxu0
        %v1806 = vpack.c.bf16 %v1747, %v1744
        %v1807 = vpack.c.bf16 %v1755, %v1752
        %v1808 = vpack.c.bf16 %v1763, %v1760
        %v1809 = vpack.c.bf16 %v1771, %v1768
        %v1810 = vpack.c.bf16 %v1779, %v1776
        %v1811 = vpack.c.bf16 %v1787, %v1784
        %v1812 = vpack.c.bf16 %v1795, %v1792
        %v1813 = vpack.c.bf16 %v1803, %v1800
        %v1815 = vsel %vm1553, %v1518, 0
        %v1818 = vsel %vm1553, %v1519, 0
        %v1821 = vsel %vm1553, %v1520, 0
        %v1824 = vsel %vm1553, %v1521, 0
        %v1827 = vsel %vm1553, %v1522, 0
        %v1830 = vsel %vm1553, %v1523, 0
        %v1833 = vsel %vm1553, %v1524, 0
        %v1836 = vsel %vm1553, %v1525, 0
        %v1839 = vsel %vm1553, %v1667, 0
        %v1842 = vsel %vm1553, %v1668, 0
        %v1845 = vsel %vm1553, %v1669, 0
        %v1848 = vsel %vm1553, %v1670, 0
        %v1851 = vsel %vm1553, %v1671, 0
        %v1854 = vsel %vm1553, %v1672, 0
        %v1857 = vsel %vm1553, %v1673, 0
        %v1860 = vsel %vm1553, %v1674, 0
        %1862 = vmatprep.subr.bf16.mxu0 0
        %1863 = vmatpush1.bf16.xpose.msra.mxu0 %v1839
        %1864 = vmatprep.subr.bf16.mxu0 0
        %1865 = vmatpush1.bf16.xpose.msra.mxu0 %v1842
        %1866 = vmatprep.subr.bf16.mxu0 0
        %1867 = vmatpush1.bf16.xpose.msra.mxu0 %v1845
        %1868 = vmatprep.subr.bf16.mxu0 0
        %1869 = vmatpush1.bf16.xpose.msra.mxu0 %v1848
        %1870 = vmatprep.subr.bf16.mxu0 0
        %1871 = vmatpush1.bf16.xpose.msra.mxu0 %v1851
        %1872 = vmatprep.subr.bf16.mxu0 0
        %1873 = vmatpush1.bf16.xpose.msra.mxu0 %v1854
        %1874 = vmatprep.subr.bf16.mxu0 0
        %1875 = vmatpush1.bf16.xpose.msra.mxu0 %v1857
        %1876 = vmatprep.subr.bf16.mxu0 0
        %1877 = vmatpush1.bf16.xpose.msra.mxu0 %v1860
        %1878 = vmatprep.subr.bf16.mxu0 0
        %1879 = vmatpush1.bf16.xpose.msra.mxu0 0
        %1880 = vmatprep.subr.bf16.mxu0 0
        %1881 = vmatpush1.bf16.xpose.msra.mxu0 0
        %1882 = vmatprep.subr.bf16.mxu0 0
        %1883 = vmatpush1.bf16.xpose.msra.mxu0 0
        %1884 = vmatprep.subr.bf16.mxu0 0
        %1885 = vmatpush1.bf16.xpose.msra.mxu0 0
        %1886 = vmatprep.subr.bf16.mxu0 0
        %1887 = vmatpush1.bf16.xpose.msra.mxu0 0
        %1888 = vmatprep.subr.bf16.mxu0 0
        %1889 = vmatpush1.bf16.xpose.msra.mxu0 0
        %1890 = vmatprep.subr.bf16.mxu0 0
        %1891 = vmatpush1.bf16.xpose.msra.mxu0 0
        %1892 = vmatprep.subr.bf16.mxu0 0
        %1893 = vmatpush1.bf16.xpose.msra.mxu0 0
        %1894 = vmatprep.mubr.bf16.mxu0 0
        %1895 = vmatmul.mubr.bf16.gmra.mrb[0].mxu0 %v1815
        %v1896 = vpop.f32.mrb[0].mxu0
        %v1897 = vadd.f32 0.0, %v1896
        %v1898 = vpop.f32.mrb[0].mxu0
        %v1899 = vpop.f32.mrb[0].mxu0
        %v1900 = vadd.f32 0.0, %v1899
        %v1901 = vpop.f32.mrb[0].mxu0
        %1902 = vmatprep.mubr.bf16.mxu0 0
        %1903 = vmatmul.mubr.bf16.gmra.mrb[0].mxu0 %v1818
        %v1904 = vpop.f32.mrb[0].mxu0
        %v1905 = vadd.f32 0.0, %v1904
        %v1906 = vpop.f32.mrb[0].mxu0
        %v1907 = vpop.f32.mrb[0].mxu0
        %v1908 = vadd.f32 0.0, %v1907
        %v1909 = vpop.f32.mrb[0].mxu0
        %1910 = vmatprep.mubr.bf16.mxu0 0
        %1911 = vmatmul.mubr.bf16.gmra.mrb[0].mxu0 %v1821
        %v1912 = vpop.f32.mrb[0].mxu0
        %v1913 = vadd.f32 0.0, %v1912
        %v1914 = vpop.f32.mrb[0].mxu0
        %v1915 = vpop.f32.mrb[0].mxu0
        %v1916 = vadd.f32 0.0, %v1915
        %v1917 = vpop.f32.mrb[0].mxu0
        %1918 = vmatprep.mubr.bf16.mxu0 0
        %1919 = vmatmul.mubr.bf16.gmra.mrb[0].mxu0 %v1824
        %v1920 = vpop.f32.mrb[0].mxu0
        %v1921 = vadd.f32 0.0, %v1920
        %v1922 = vpop.f32.mrb[0].mxu0
        %v1923 = vpop.f32.mrb[0].mxu0
        %v1924 = vadd.f32 0.0, %v1923
        %v1925 = vpop.f32.mrb[0].mxu0
        %1926 = vmatprep.mubr.bf16.mxu0 0
        %1927 = vmatmul.mubr.bf16.gmra.mrb[0].mxu0 %v1827
        %v1928 = vpop.f32.mrb[0].mxu0
        %v1929 = vadd.f32 0.0, %v1928
        %v1930 = vpop.f32.mrb[0].mxu0
        %v1931 = vpop.f32.mrb[0].mxu0
        %v1932 = vadd.f32 0.0, %v1931
        %v1933 = vpop.f32.mrb[0].mxu0
        %1934 = vmatprep.mubr.bf16.mxu0 0
        %1935 = vmatmul.mubr.bf16.gmra.mrb[0].mxu0 %v1830
        %v1936 = vpop.f32.mrb[0].mxu0
        %v1937 = vadd.f32 0.0, %v1936
        %v1938 = vpop.f32.mrb[0].mxu0
        %v1939 = vpop.f32.mrb[0].mxu0
        %v1940 = vadd.f32 0.0, %v1939
        %v1941 = vpop.f32.mrb[0].mxu0
        %1942 = vmatprep.mubr.bf16.mxu0 0
        %1943 = vmatmul.mubr.bf16.gmra.mrb[0].mxu0 %v1833
        %v1944 = vpop.f32.mrb[0].mxu0
        %v1945 = vadd.f32 0.0, %v1944
        %v1946 = vpop.f32.mrb[0].mxu0
        %v1947 = vpop.f32.mrb[0].mxu0
        %v1948 = vadd.f32 0.0, %v1947
        %v1949 = vpop.f32.mrb[0].mxu0
        %1950 = vmatprep.mubr.bf16.mxu0 0
        %1951 = vmatmul.mubr.bf16.gmra.mrb[0].mxu0 %v1836
        %v1952 = vpop.f32.mrb[0].mxu0
        %v1953 = vadd.f32 0.0, %v1952
        %v1954 = vpop.f32.mrb[0].mxu0
        %v1955 = vpop.f32.mrb[0].mxu0
        %v1956 = vadd.f32 0.0, %v1955
        %v1957 = vpop.f32.mrb[0].mxu0
        %1958 = vdwg.mxu0
        %v1959 = vsel %vm1308, %v1897, -inf
        %v1960 = vsel %vm1309, %v1900, -inf
        %v1961 = vsel %vm1310, %v1905, -inf
        %v1962 = vsel %vm1311, %v1908, -inf
        %v1963 = vsel %vm1312, %v1913, -inf
        %v1964 = vsel %vm1313, %v1916, -inf
        %v1965 = vsel %vm1314, %v1921, -inf
        %v1966 = vsel %vm1315, %v1924, -inf
        %v1967 = vsel %vm1316, %v1929, -inf
        %v1968 = vsel %vm1317, %v1932, -inf
        %v1969 = vsel %vm1318, %v1937, -inf
        %v1970 = vsel %vm1319, %v1940, -inf
        %v1971 = vsel %vm1320, %v1945, -inf
        %v1972 = vsel %vm1321, %v1948, -inf
        %v1973 = vsel %vm1322, %v1953, -inf
        %v1974 = vsel %vm1323, %v1956, -inf
        %1975 = vmax.xlane.f32.xlu0 %v1959
        %v1976 = vpop.xlane.xlu0 %1975
        %1977 = vmax.xlane.f32.xlu0 %v1960
        %v1978 = vpop.xlane.xlu0 %1977
        %1979 = vmax.xlane.f32.xlu0 %v1961
        %v1980 = vpop.xlane.xlu0 %1979
        %1981 = vmax.xlane.f32.xlu0 %v1962
        %v1982 = vpop.xlane.xlu0 %1981
        %1983 = vmax.xlane.f32.xlu0 %v1963
        %v1984 = vpop.xlane.xlu0 %1983
        %1985 = vmax.xlane.f32.xlu0 %v1964
        %v1986 = vpop.xlane.xlu0 %1985
        %1987 = vmax.xlane.f32.xlu0 %v1965
        %v1988 = vpop.xlane.xlu0 %1987
        %1989 = vmax.xlane.f32.xlu0 %v1966
        %v1990 = vpop.xlane.xlu0 %1989
        %1991 = vmax.xlane.f32.xlu0 %v1967
        %v1992 = vpop.xlane.xlu0 %1991
        %1993 = vmax.xlane.f32.xlu0 %v1968
        %v1994 = vpop.xlane.xlu0 %1993
        %1995 = vmax.xlane.f32.xlu0 %v1969
        %v1996 = vpop.xlane.xlu0 %1995
        %1997 = vmax.xlane.f32.xlu0 %v1970
        %v1998 = vpop.xlane.xlu0 %1997
        %1999 = vmax.xlane.f32.xlu0 %v1971
        %v2000 = vpop.xlane.xlu0 %1999
        %2001 = vmax.xlane.f32.xlu0 %v1972
        %v2002 = vpop.xlane.xlu0 %2001
        %2003 = vmax.xlane.f32.xlu0 %v1973
        %v2004 = vpop.xlane.xlu0 %2003
        %2005 = vmax.xlane.f32.xlu0 %v1974
        %v2006 = vpop.xlane.xlu0 %2005
        %v2007 = vsub.f32 %v1959, %v1976
        %v2008 = vsub.f32 %v1960, %v1978
        %v2009 = vsub.f32 %v1961, %v1980
        %v2010 = vsub.f32 %v1962, %v1982
        %v2011 = vsub.f32 %v1963, %v1984
        %v2012 = vsub.f32 %v1964, %v1986
        %v2013 = vsub.f32 %v1965, %v1988
        %v2014 = vsub.f32 %v1966, %v1990
        %v2015 = vsub.f32 %v1967, %v1992
        %v2016 = vsub.f32 %v1968, %v1994
        %v2017 = vsub.f32 %v1969, %v1996
        %v2018 = vsub.f32 %v1970, %v1998
        %v2019 = vsub.f32 %v1971, %v2000
        %v2020 = vsub.f32 %v1972, %v2002
        %v2021 = vsub.f32 %v1973, %v2004
        %v2022 = vsub.f32 %v1974, %v2006
        %v2023 = vmul.f32 %v2007, 1.442695
        %v2024 = vpow.pop %v2023
        %v2025 = vmul.f32 %v2008, 1.442695
        %v2026 = vpow.pop %v2025
        %v2027 = vmul.f32 %v2009, 1.442695
        %v2028 = vpow.pop %v2027
        %v2029 = vmul.f32 %v2010, 1.442695
        %v2030 = vpow.pop %v2029
        %v2031 = vmul.f32 %v2011, 1.442695
        %v2032 = vpow.pop %v2031
        %v2033 = vmul.f32 %v2012, 1.442695
        %v2034 = vpow.pop %v2033
        %v2035 = vmul.f32 %v2013, 1.442695
        %v2036 = vpow.pop %v2035
        %v2037 = vmul.f32 %v2014, 1.442695
        %v2038 = vpow.pop %v2037
        %v2039 = vmul.f32 %v2015, 1.442695
        %v2040 = vpow.pop %v2039
        %v2041 = vmul.f32 %v2016, 1.442695
        %v2042 = vpow.pop %v2041
        %v2043 = vmul.f32 %v2017, 1.442695
        %v2044 = vpow.pop %v2043
        %v2045 = vmul.f32 %v2018, 1.442695
        %v2046 = vpow.pop %v2045
        %v2047 = vmul.f32 %v2019, 1.442695
        %v2048 = vpow.pop %v2047
        %v2049 = vmul.f32 %v2020, 1.442695
        %v2050 = vpow.pop %v2049
        %v2051 = vmul.f32 %v2021, 1.442695
        %v2052 = vpow.pop %v2051
        %v2053 = vmul.f32 %v2022, 1.442695
        %v2054 = vpow.pop %v2053
        %2055 = vadd.xlane.f32.xlu0 %v2024
        %v2056 = vpop.xlane.xlu0 %2055
        %2057 = vadd.xlane.f32.xlu0 %v2026
        %v2058 = vpop.xlane.xlu0 %2057
        %2059 = vadd.xlane.f32.xlu0 %v2028
        %v2060 = vpop.xlane.xlu0 %2059
        %2061 = vadd.xlane.f32.xlu0 %v2030
        %v2062 = vpop.xlane.xlu0 %2061
        %2063 = vadd.xlane.f32.xlu0 %v2032
        %v2064 = vpop.xlane.xlu0 %2063
        %2065 = vadd.xlane.f32.xlu0 %v2034
        %v2066 = vpop.xlane.xlu0 %2065
        %2067 = vadd.xlane.f32.xlu0 %v2036
        %v2068 = vpop.xlane.xlu0 %2067
        %2069 = vadd.xlane.f32.xlu0 %v2038
        %v2070 = vpop.xlane.xlu0 %2069
        %2071 = vadd.xlane.f32.xlu0 %v2040
        %v2072 = vpop.xlane.xlu0 %2071
        %2073 = vadd.xlane.f32.xlu0 %v2042
        %v2074 = vpop.xlane.xlu0 %2073
        %2075 = vadd.xlane.f32.xlu0 %v2044
        %v2076 = vpop.xlane.xlu0 %2075
        %2077 = vadd.xlane.f32.xlu0 %v2046
        %v2078 = vpop.xlane.xlu0 %2077
        %2079 = vadd.xlane.f32.xlu0 %v2048
        %v2080 = vpop.xlane.xlu0 %2079
        %2081 = vadd.xlane.f32.xlu0 %v2050
        %v2082 = vpop.xlane.xlu0 %2081
        %2083 = vadd.xlane.f32.xlu0 %v2052
        %v2084 = vpop.xlane.xlu0 %2083
        %2085 = vadd.xlane.f32.xlu0 %v2054
        %v2086 = vpop.xlane.xlu0 %2085
        %v2087 = vrcp.pop %v2056
        %v2088 = vrcp.pop %v2058
        %v2089 = vrcp.pop %v2060
        %v2090 = vrcp.pop %v2062
        %v2091 = vrcp.pop %v2064
        %v2092 = vrcp.pop %v2066
        %v2093 = vrcp.pop %v2068
        %v2094 = vrcp.pop %v2070
        %v2095 = vrcp.pop %v2072
        %v2096 = vrcp.pop %v2074
        %v2097 = vrcp.pop %v2076
        %v2098 = vrcp.pop %v2078
        %v2099 = vrcp.pop %v2080
        %v2100 = vrcp.pop %v2082
        %v2101 = vrcp.pop %v2084
        %v2102 = vrcp.pop %v2086
        %v2103 = vmul.f32 %v2024, %v2087
        %v2104 = vmul.f32 %v2026, %v2088
        %v2105 = vmul.f32 %v2028, %v2089
        %v2106 = vmul.f32 %v2030, %v2090
        %v2107 = vmul.f32 %v2032, %v2091
        %v2108 = vmul.f32 %v2034, %v2092
        %v2109 = vmul.f32 %v2036, %v2093
        %v2110 = vmul.f32 %v2038, %v2094
        %v2111 = vmul.f32 %v2040, %v2095
        %v2112 = vmul.f32 %v2042, %v2096
        %v2113 = vmul.f32 %v2044, %v2097
        %v2114 = vmul.f32 %v2046, %v2098
        %v2115 = vmul.f32 %v2048, %v2099
        %v2116 = vmul.f32 %v2050, %v2100
        %v2117 = vmul.f32 %v2052, %v2101
        %v2118 = vmul.f32 %v2054, %v2102
        %v2119 = vpack.c.bf16 %v2104, %v2103
        %v2120 = vpack.c.bf16 %v2106, %v2105
        %v2121 = vpack.c.bf16 %v2108, %v2107
        %v2122 = vpack.c.bf16 %v2110, %v2109
        %v2123 = vpack.c.bf16 %v2112, %v2111
        %v2124 = vpack.c.bf16 %v2114, %v2113
        %v2125 = vpack.c.bf16 %v2116, %v2115
        %v2126 = vpack.c.bf16 %v2118, %v2117
        %2127 = vmatprep.subr.bf16.mxu0 0
        %2128 = vmatpush1.bf16.msra.mxu0 %v1806
        %2129 = vmatprep.subr.bf16.mxu0 0
        %2130 = vmatpush1.bf16.msra.mxu0 %v1807
        %2131 = vmatprep.subr.bf16.mxu0 0
        %2132 = vmatpush1.bf16.msra.mxu0 %v1808
        %2133 = vmatprep.subr.bf16.mxu0 0
        %2134 = vmatpush1.bf16.msra.mxu0 %v1809
        %2135 = vmatprep.subr.bf16.mxu0 0
        %2136 = vmatpush1.bf16.msra.mxu0 %v1810
        %2137 = vmatprep.subr.bf16.mxu0 0
        %2138 = vmatpush1.bf16.msra.mxu0 %v1811
        %2139 = vmatprep.subr.bf16.mxu0 0
        %2140 = vmatpush1.bf16.msra.mxu0 %v1812
        %2141 = vmatprep.subr.bf16.mxu0 0
        %2142 = vmatpush1.bf16.msra.mxu0 %v1813
        %2143 = vmatprep.subr.bf16.mxu0 0
        %2144 = vmatpush1.bf16.msra.mxu0 0
        %2145 = vmatprep.subr.bf16.mxu0 0
        %2146 = vmatpush1.bf16.msra.mxu0 0
        %2147 = vmatprep.subr.bf16.mxu0 0
        %2148 = vmatpush1.bf16.msra.mxu0 0
        %2149 = vmatprep.subr.bf16.mxu0 0
        %2150 = vmatpush1.bf16.msra.mxu0 0
        %2151 = vmatprep.subr.bf16.mxu0 0
        %2152 = vmatpush1.bf16.msra.mxu0 0
        %2153 = vmatprep.subr.bf16.mxu0 0
        %2154 = vmatpush1.bf16.msra.mxu0 0
        %2155 = vmatprep.subr.bf16.mxu0 0
        %2156 = vmatpush1.bf16.msra.mxu0 0
        %2157 = vmatprep.subr.bf16.mxu0 0
        %2158 = vmatpush1.bf16.msra.mxu0 0
        %2159 = vmatprep.mubr.bf16.mxu0 0
        %2160 = vmatmul.mubr.bf16.gmra.mrb[0].mxu0 %v2119
        %v2161 = vpop.f32.mrb[0].mxu0
        %v2162 = vadd.f32 0.0, %v2161
        %v2163 = vpop.f32.mrb[0].mxu0
        %v2164 = vpop.f32.mrb[0].mxu0
        %v2165 = vadd.f32 0.0, %v2164
        %v2166 = vpop.f32.mrb[0].mxu0
        %2167 = vmatprep.mubr.bf16.mxu0 0
        %2168 = vmatmul.mubr.bf16.gmra.mrb[0].mxu0 %v2120
        %v2169 = vpop.f32.mrb[0].mxu0
        %v2170 = vadd.f32 0.0, %v2169
        %v2171 = vpop.f32.mrb[0].mxu0
        %v2172 = vpop.f32.mrb[0].mxu0
        %v2173 = vadd.f32 0.0, %v2172
        %v2174 = vpop.f32.mrb[0].mxu0
        %2175 = vmatprep.mubr.bf16.mxu0 0
        %2176 = vmatmul.mubr.bf16.gmra.mrb[0].mxu0 %v2121
        %v2177 = vpop.f32.mrb[0].mxu0
        %v2178 = vadd.f32 0.0, %v2177
        %v2179 = vpop.f32.mrb[0].mxu0
        %v2180 = vpop.f32.mrb[0].mxu0
        %v2181 = vadd.f32 0.0, %v2180
        %v2182 = vpop.f32.mrb[0].mxu0
        %2183 = vmatprep.mubr.bf16.mxu0 0
        %2184 = vmatmul.mubr.bf16.gmra.mrb[0].mxu0 %v2122
        %v2185 = vpop.f32.mrb[0].mxu0
        %v2186 = vadd.f32 0.0, %v2185
        %v2187 = vpop.f32.mrb[0].mxu0
        %v2188 = vpop.f32.mrb[0].mxu0
        %v2189 = vadd.f32 0.0, %v2188
        %v2190 = vpop.f32.mrb[0].mxu0
        %2191 = vmatprep.mubr.bf16.mxu0 0
        %2192 = vmatmul.mubr.bf16.gmra.mrb[0].mxu0 %v2123
        %v2193 = vpop.f32.mrb[0].mxu0
        %v2194 = vadd.f32 0.0, %v2193
        %v2195 = vpop.f32.mrb[0].mxu0
        %v2196 = vpop.f32.mrb[0].mxu0
        %v2197 = vadd.f32 0.0, %v2196
        %v2198 = vpop.f32.mrb[0].mxu0
        %2199 = vmatprep.mubr.bf16.mxu0 0
        %2200 = vmatmul.mubr.bf16.gmra.mrb[0].mxu0 %v2124
        %v2201 = vpop.f32.mrb[0].mxu0
        %v2202 = vadd.f32 0.0, %v2201
        %v2203 = vpop.f32.mrb[0].mxu0
        %v2204 = vpop.f32.mrb[0].mxu0
        %v2205 = vadd.f32 0.0, %v2204
        %v2206 = vpop.f32.mrb[0].mxu0
        %2207 = vmatprep.mubr.bf16.mxu0 0
        %2208 = vmatmul.mubr.bf16.gmra.mrb[0].mxu0 %v2125
        %v2209 = vpop.f32.mrb[0].mxu0
        %v2210 = vadd.f32 0.0, %v2209
        %v2211 = vpop.f32.mrb[0].mxu0
        %v2212 = vpop.f32.mrb[0].mxu0
        %v2213 = vadd.f32 0.0, %v2212
        %v2214 = vpop.f32.mrb[0].mxu0
        %2215 = vmatprep.mubr.bf16.mxu0 0
        %2216 = vmatmul.mubr.bf16.gmra.mrb[0].mxu0 %v2126
        %v2217 = vpop.f32.mrb[0].mxu0
        %v2218 = vadd.f32 0.0, %v2217
        %v2219 = vpop.f32.mrb[0].mxu0
        %v2220 = vpop.f32.mrb[0].mxu0
        %v2221 = vadd.f32 0.0, %v2220
        %v2222 = vpop.f32.mrb[0].mxu0
        %2223 = vdwg.mxu0
        %v2224 = vpack.c.bf16 %v2165, %v2162
        %v2225 = vpack.c.bf16 %v2173, %v2170
        %v2226 = vpack.c.bf16 %v2181, %v2178
        %v2227 = vpack.c.bf16 %v2189, %v2186
        %v2228 = vpack.c.bf16 %v2197, %v2194
        %v2229 = vpack.c.bf16 %v2205, %v2202
        %v2230 = vpack.c.bf16 %v2213, %v2210
        %v2231 = vpack.c.bf16 %v2221, %v2218
        %s2232 = smul.addr %s1362, 4
        %s2233 = scalar_lea.vmem %s11, %s2232
        %v2234 = vld [vmem:[%s2233] sm:$0xf]
        %v2235 = vld [vmem:[%s2233 + $0x4] sm:$0xf]
        %v2236 = vld [vmem:[%s2233 + $0x8] sm:$0xf]
        %v2237 = vld [vmem:[%s2233 + $0xc] sm:$0xf]
        %v2242 = vunpack.c.l.b16 %v2234
        %v2243 = vunpack.c.l.b16 %v2235
        %v2244 = vunpack.c.l.b16 %v2236
        %v2245 = vunpack.c.l.b16 %v2237
        %v2246 = vpack.c.b16 %v2243, %v2242
        %v2247 = vpack.c.b16 %v2245, %v2244
        %v2251 = vsel %vm899, %v2224, 0
        %v2254 = vsel %vm899, %v2225, 0
        %v2257 = vsel %vm899, %v2226, 0
        %v2260 = vsel %vm899, %v2227, 0
        %v2263 = vsel %vm899, %v2228, 0
        %v2266 = vsel %vm899, %v2229, 0
        %v2269 = vsel %vm899, %v2230, 0
        %v2272 = vsel %vm899, %v2231, 0
        %2274 = vmatprep.subr.bf16.mxu0 0
        %2275 = vmatpush1.bf16.msra.mxu0 %v2246
        %2276 = vmatprep.subr.bf16.mxu0 0
        %2277 = vmatpush1.bf16.msra.mxu0 %v2247
        %2278 = vmatprep.subr.bf16.mxu0 0
        %2279 = vmatpush1.bf16.msra.mxu0 0
        %2280 = vmatprep.subr.bf16.mxu0 0
        %2281 = vmatpush1.bf16.msra.mxu0 0
        %2282 = vmatprep.subr.bf16.mxu0 0
        %2283 = vmatpush1.bf16.msra.mxu0 0
        %2284 = vmatprep.subr.bf16.mxu0 0
        %2285 = vmatpush1.bf16.msra.mxu0 0
        %2286 = vmatprep.subr.bf16.mxu0 0
        %2287 = vmatpush1.bf16.msra.mxu0 0
        %2288 = vmatprep.subr.bf16.mxu0 0
        %2289 = vmatpush1.bf16.msra.mxu0 0
        %2290 = vmatprep.subr.bf16.mxu0 0
        %2291 = vmatpush1.bf16.msra.mxu0 0
        %2292 = vmatprep.subr.bf16.mxu0 0
        %2293 = vmatpush1.bf16.msra.mxu0 0
        %2294 = vmatprep.subr.bf16.mxu0 0
        %2295 = vmatpush1.bf16.msra.mxu0 0
        %2296 = vmatprep.subr.bf16.mxu0 0
        %2297 = vmatpush1.bf16.msra.mxu0 0
        %2298 = vmatprep.subr.bf16.mxu0 0
        %2299 = vmatpush1.bf16.msra.mxu0 0
        %2300 = vmatprep.subr.bf16.mxu0 0
        %2301 = vmatpush1.bf16.msra.mxu0 0
        %2302 = vmatprep.subr.bf16.mxu0 0
        %2303 = vmatpush1.bf16.msra.mxu0 0
        %2304 = vmatprep.subr.bf16.mxu0 0
        %2305 = vmatpush1.bf16.msra.mxu0 0
        %2306 = vmatprep.mubr.bf16.mxu0 0
        %2307 = vmatmul.mubr.bf16.gmra.mrb[0].mxu0 %v2251
        %v2308 = vpop.f32.mrb[0].mxu0
        %v2309 = vadd.f32 0.0, %v2308
        %v2310 = vpop.f32.mrb[0].mxu0
        %v2311 = vpop.f32.mrb[0].mxu0
        %v2312 = vadd.f32 0.0, %v2311
        %v2313 = vpop.f32.mrb[0].mxu0
        %2314 = vmatprep.mubr.bf16.mxu0 0
        %2315 = vmatmul.mubr.bf16.gmra.mrb[0].mxu0 %v2254
        %v2316 = vpop.f32.mrb[0].mxu0
        %v2317 = vadd.f32 0.0, %v2316
        %v2318 = vpop.f32.mrb[0].mxu0
        %v2319 = vpop.f32.mrb[0].mxu0
        %v2320 = vadd.f32 0.0, %v2319
        %v2321 = vpop.f32.mrb[0].mxu0
        %2322 = vmatprep.mubr.bf16.mxu0 0
        %2323 = vmatmul.mubr.bf16.gmra.mrb[0].mxu0 %v2257
        %v2324 = vpop.f32.mrb[0].mxu0
        %v2325 = vadd.f32 0.0, %v2324
        %v2326 = vpop.f32.mrb[0].mxu0
        %v2327 = vpop.f32.mrb[0].mxu0
        %v2328 = vadd.f32 0.0, %v2327
        %v2329 = vpop.f32.mrb[0].mxu0
        %2330 = vmatprep.mubr.bf16.mxu0 0
        %2331 = vmatmul.mubr.bf16.gmra.mrb[0].mxu0 %v2260
        %v2332 = vpop.f32.mrb[0].mxu0
        %v2333 = vadd.f32 0.0, %v2332
        %v2334 = vpop.f32.mrb[0].mxu0
        %v2335 = vpop.f32.mrb[0].mxu0
        %v2336 = vadd.f32 0.0, %v2335
        %v2337 = vpop.f32.mrb[0].mxu0
        %2338 = vmatprep.mubr.bf16.mxu0 0
        %2339 = vmatmul.mubr.bf16.gmra.mrb[0].mxu0 %v2263
        %v2340 = vpop.f32.mrb[0].mxu0
        %v2341 = vadd.f32 0.0, %v2340
        %v2342 = vpop.f32.mrb[0].mxu0
        %v2343 = vpop.f32.mrb[0].mxu0
        %v2344 = vadd.f32 0.0, %v2343
        %v2345 = vpop.f32.mrb[0].mxu0
        %2346 = vmatprep.mubr.bf16.mxu0 0
        %2347 = vmatmul.mubr.bf16.gmra.mrb[0].mxu0 %v2266
        %v2348 = vpop.f32.mrb[0].mxu0
        %v2349 = vadd.f32 0.0, %v2348
        %v2350 = vpop.f32.mrb[0].mxu0
        %v2351 = vpop.f32.mrb[0].mxu0
        %v2352 = vadd.f32 0.0, %v2351
        %v2353 = vpop.f32.mrb[0].mxu0
        %2354 = vmatprep.mubr.bf16.mxu0 0
        %2355 = vmatmul.mubr.bf16.gmra.mrb[0].mxu0 %v2269
        %v2356 = vpop.f32.mrb[0].mxu0
        %v2357 = vadd.f32 0.0, %v2356
        %v2358 = vpop.f32.mrb[0].mxu0
        %v2359 = vpop.f32.mrb[0].mxu0
        %v2360 = vadd.f32 0.0, %v2359
        %v2361 = vpop.f32.mrb[0].mxu0
        %2362 = vmatprep.mubr.bf16.mxu0 0
        %2363 = vmatmul.mubr.bf16.gmra.mrb[0].mxu0 %v2272
        %v2364 = vpop.f32.mrb[0].mxu0
        %v2365 = vadd.f32 0.0, %v2364
        %v2366 = vpop.f32.mrb[0].mxu0
        %v2367 = vpop.f32.mrb[0].mxu0
        %v2368 = vadd.f32 0.0, %v2367
        %v2369 = vpop.f32.mrb[0].mxu0
        %2370 = vdwg.mxu0
        %v2371 = vadd.f32 %v1346, %v2309
        %v2372 = vadd.f32 %v1347, %v2312
        %v2373 = vadd.f32 %v1348, %v2317
        %v2374 = vadd.f32 %v1349, %v2320
        %v2375 = vadd.f32 %v1350, %v2325
        %v2376 = vadd.f32 %v1351, %v2328
        %v2377 = vadd.f32 %v1352, %v2333
        %v2378 = vadd.f32 %v1353, %v2336
        %v2379 = vadd.f32 %v1354, %v2341
        %v2380 = vadd.f32 %v1355, %v2344
        %v2381 = vadd.f32 %v1356, %v2349
        %v2382 = vadd.f32 %v1357, %v2352
        %v2383 = vadd.f32 %v1358, %v2357
        %v2384 = vadd.f32 %v1359, %v2360
        %v2385 = vadd.f32 %v1360, %v2365
        %v2386 = vadd.f32 %v1361, %v2368
      $region73: #{wrapped_mla_forward.1} parent=67 // loop_footer
        %s1345 = sadd.s32 1, %s1341
      $region74: #{wrapped_mla_forward.1} parent=67 // loop_footer_branch
        %1340 = sbr.rel target = $region70
      $region75: #{wrapped_mla_forward.1} parent=67 // loop_exit
        _
      %v2387 = vpack.c.bf16 %v1347, %v1346
      %v2388 = vpack.c.bf16 %v1349, %v1348
      %v2389 = vpack.c.bf16 %v1351, %v1350
      %v2390 = vpack.c.bf16 %v1353, %v1352
      %v2391 = vpack.c.bf16 %v1355, %v1354
      %v2392 = vpack.c.bf16 %v1357, %v1356
      %v2393 = vpack.c.bf16 %v1359, %v1358
      %v2394 = vpack.c.bf16 %v1361, %v1360
      %v2403 = vunpack.c.l.b16 %v2387
      %v2404 = vunpack.c.h.b16 %v2387
      %v2405 = vunpack.c.l.b16 %v2388
      %v2406 = vunpack.c.h.b16 %v2388
      %v2407 = vunpack.c.l.b16 %v2389
      %v2408 = vunpack.c.h.b16 %v2389
      %v2409 = vunpack.c.l.b16 %v2390
      %v2410 = vunpack.c.h.b16 %v2390
      %v2411 = vunpack.c.l.b16 %v2391
      %v2412 = vunpack.c.h.b16 %v2391
      %v2413 = vunpack.c.l.b16 %v2392
      %v2414 = vunpack.c.h.b16 %v2392
      %v2415 = vunpack.c.l.b16 %v2393
      %v2416 = vunpack.c.h.b16 %v2393
      %v2417 = vunpack.c.l.b16 %v2394
      %v2418 = vunpack.c.h.b16 %v2394
      %v2419 = vpack.c.b16 %v2403, %v2403
      %v2420 = vpack.c.b16 %v2404, %v2404
      %v2421 = vpack.c.b16 %v2405, %v2405
      %v2422 = vpack.c.b16 %v2406, %v2406
      %v2423 = vpack.c.b16 %v2407, %v2407
      %v2424 = vpack.c.b16 %v2408, %v2408
      %v2425 = vpack.c.b16 %v2409, %v2409
      %v2426 = vpack.c.b16 %v2410, %v2410
      %v2427 = vpack.c.b16 %v2411, %v2411
      %v2428 = vpack.c.b16 %v2412, %v2412
      %v2429 = vpack.c.b16 %v2413, %v2413
      %v2430 = vpack.c.b16 %v2414, %v2414
      %v2431 = vpack.c.b16 %v2415, %v2415
      %v2432 = vpack.c.b16 %v2416, %v2416
      %v2433 = vpack.c.b16 %v2417, %v2417
      %v2434 = vpack.c.b16 %v2418, %v2418
      %vm2451 = vcmask 519168
      %2452 = vst.msk [vmem:[%s413] sm:$0xf] %vm2451, %v2419
      %2453 = vst.msk [vmem:[%s413 + $0x4] sm:$0xf] %vm2451, %v2420
      %2454 = vst.msk [vmem:[%s413 + $0x8] sm:$0xf] %vm2451, %v2421
      %2455 = vst.msk [vmem:[%s413 + $0xc] sm:$0xf] %vm2451, %v2422
      %2456 = vst.msk [vmem:[%s413 + $0x10] sm:$0xf] %vm2451, %v2423
      %2457 = vst.msk [vmem:[%s413 + $0x14] sm:$0xf] %vm2451, %v2424
      %2458 = vst.msk [vmem:[%s413 + $0x18] sm:$0xf] %vm2451, %v2425
      %2459 = vst.msk [vmem:[%s413 + $0x1c] sm:$0xf] %vm2451, %v2426
      %2460 = vst.msk [vmem:[%s413 + $0x20] sm:$0xf] %vm2451, %v2427
      %2461 = vst.msk [vmem:[%s413 + $0x24] sm:$0xf] %vm2451, %v2428
      %2462 = vst.msk [vmem:[%s413 + $0x28] sm:$0xf] %vm2451, %v2429
      %2463 = vst.msk [vmem:[%s413 + $0x2c] sm:$0xf] %vm2451, %v2430
      %2464 = vst.msk [vmem:[%s413 + $0x30] sm:$0xf] %vm2451, %v2431
      %2465 = vst.msk [vmem:[%s413 + $0x34] sm:$0xf] %vm2451, %v2432
      %2466 = vst.msk [vmem:[%s413 + $0x38] sm:$0xf] %vm2451, %v2433
      %2467 = vst.msk [vmem:[%s413 + $0x3c] sm:$0xf] %vm2451, %v2434
      %p2468 = scmp.lt.s32.totalorder %s23, 1
      %s2469 = scalar_select %p2468, %s23, 1
      %s2470 = smul.addr %s2469, 16
      %s2471 = smul.addr %s2470, 4
      %s2472 = scalar_lea.vmem %s12, %s2471
      // Predicated region
      $region76: #{wrapped_mla_forward.1} parent=67 // pred_check
        %p2473 = pneg %p298
      $region77: #{wrapped_mla_forward.1} parent=67 // pred_check_branch
        %2475 = sbr.rel (%p2473) target = $region79
      $region78: #{wrapped_mla_forward.1} parent=67 // pred_region
        _
      $region79: #{wrapped_mla_forward.1} parent=67 // pred_fallthru
        _
    $region68: #{wrapped_mla_forward.1} parent=5 // pred_fallthru
      _
    %p2476 = scmp.le.s32.totalorder 2, %s18
    // Predicated region
    $region80: #{wrapped_mla_forward.1} parent=5 // pred_check
      %p2477 = pneg %p2476
    $region81: #{wrapped_mla_forward.1} parent=5 // pred_check_branch
      %2479 = sbr.rel (%p2477) target = $region83
    $region82: #{wrapped_mla_forward.1} parent=5 // pred_region
      %s2480 = ssub.s32 %s18, 2
      // Predicated region
      $region84: #{wrapped_mla_forward.1} parent=82 // pred_check
        %p2481 = pneg %p304
      $region85: #{wrapped_mla_forward.1} parent=82 // pred_check_branch
        %2483 = sbr.rel (%p2481) target = $region87
      $region86: #{wrapped_mla_forward.1} parent=82 // pred_region
        %p2484 = scmp.lt.s32.totalorder %s24, 1
        %s2485 = scalar_select %p2484, %s24, 1
        %s2486 = smul.addr %s2485, 16
        %s2487 = smul.addr %s2486, 4
        %s2488 = scalar_lea.vmem %s12, %s2487
      $region87: #{wrapped_mla_forward.1} parent=82 // pred_fallthru
        _
    $region83: #{wrapped_mla_forward.1} parent=5 // pred_fallthru
      _
  $region6: #{wrapped_mla_forward.1} parent=0 // loop_footer
    %s22 = sadd.s32 1, %s18
  $region7: #{wrapped_mla_forward.1} parent=0 // loop_footer_branch
    %17 = sbr.rel target = $region3
  $region8: #{wrapped_mla_forward.1} parent=0 // loop_exit
    _

</llo_original>
